<compile_context>
chip_gen: v6e
topology: v6e:2x2x1
jax: 0.10.0
libtpu: 0.0.40
codegen_flags: <defaults>
</compile_context>

<pallas_src>
import functools

import numpy as np
import jax
import jax.numpy as jnp
from jax import lax
from jax.experimental import pallas as pl
from jax.experimental.pallas import tpu as pltpu

LANE = 128


# ----------------------------------------------------------------------------
# shape-derived operator matrices (deterministic, no data dependence)
# ----------------------------------------------------------------------------
def _round_up(v, m):
    return ((v + m - 1) // m) * m


def adaptive_pool_matrix(in_size, out_size):
    """1-D averaging matrix replicating torch.nn.AdaptiveAvgPool2d bins."""
    P = np.zeros((out_size, in_size), np.float32)
    for i in range(out_size):
        start = (i * in_size) // out_size
        end = -(-((i + 1) * in_size) // out_size)  # ceil
        P[i, start:end] = 1.0 / (end - start)
    return P


def bilinear_resize_matrix(in_size, out_size, align_corners=False):
    """1-D interpolation matrix replicating F.interpolate(mode='bilinear')."""
    U = np.zeros((out_size, in_size), np.float32)
    for d in range(out_size):
        if align_corners:
            src = 0.0 if out_size == 1 else d * (in_size - 1) / (out_size - 1)
        else:
            src = (d + 0.5) * in_size / out_size - 0.5
            src = max(src, 0.0)
        i0 = min(int(np.floor(src)), in_size - 1)
        i1 = i0 + 1 if i0 < in_size - 1 else i0
        lam = src - i0
        U[d, i0] += 1.0 - lam
        U[d, i1] += lam
    return U


def _vmem_capacity():
    """Per-core VMEM capacity (generation aware); conservative fallback."""
    try:
        return int(pltpu.get_tpu_info().vmem_capacity_bytes)
    except Exception:
        return 64 << 20          # v7x per-core size: safe on every generation


def _vmem_limit(nbytes):
    cap = _vmem_capacity()
    return int(min(max(int(nbytes) + (16 << 20), 32 << 20), cap))


# ----------------------------------------------------------------------------
# Kernel A: fused PPM (adaptive avg pool for all scales + 1x1 conv + ReLU)
# ----------------------------------------------------------------------------
def _ppm_pool_conv_kernel(scale_info, cout_p, x_ref, p_ref, w1_ref, b1_ref,
                          ycat_ref, acc_ref):
    """grid = (N, n_row_chunks); the row-chunk axis is a reduction axis.

    x_ref    : (1, RH, W_hal, Cin_p)   padded-image row chunk (channels on lanes)
    p_ref    : (1, SS, RH*W_hal)       stacked adaptive-pool operator (this chunk)
    w1_ref   : (NS, Cin_p, Cout_p)     1x1 conv weights (zero padded)
    b1_ref   : (NS, 1, Cout_p)         1x1 conv biases (f32)
    ycat_ref : (1, SS, NS*Cout_p)      block-diagonal pooled+convolved features
    acc_ref  : (SS, Cin_p) f32         pooled accumulator (VMEM scratch)
    """
    j = pl.program_id(1)

    @pl.when(j == 0)
    def _init():
        acc_ref[...] = jnp.zeros_like(acc_ref)

    _, rh, w_hal, cin_p = x_ref.shape
    xm = x_ref[0].reshape(rh * w_hal, cin_p)          # layout-preserving reshape
    acc_ref[...] += jnp.dot(p_ref[0], xm, preferred_element_type=jnp.float32)

    @pl.when(j == pl.num_programs(1) - 1)
    def _finish():
        ycat_ref[0] = jnp.zeros(ycat_ref.shape[1:], ycat_ref.dtype)
        for s_idx, (off, ss_pad, ss) in enumerate(scale_info):
            pooled = acc_ref[off:off + ss_pad, :].astype(w1_ref.dtype)
            y = jnp.dot(pooled, w1_ref[s_idx],
                        preferred_element_type=jnp.float32)
            y = jnp.maximum(y + b1_ref[s_idx], 0.0)
            # zero the sublane-padding rows (ReLU(bias) != 0 there)
            rows_iota = lax.broadcasted_iota(jnp.int32, y.shape, 0)
            y = jnp.where(rows_iota < ss, y, 0.0)
            ycat_ref[0, off:off + ss_pad,
                     s_idx * cout_p:(s_idx + 1) * cout_p] = y.astype(ycat_ref.dtype)


# ----------------------------------------------------------------------------
# Kernel B: fused bilinear upsample + 3x3 conv (pad=1) + bias + ReLU
# ----------------------------------------------------------------------------
def _bottleneck_kernel(th, w, w_hal, cin_p, nscout_p, cout_p,
                       x_hbm, u_ref, ycat_ref, w3x_ref, w3b_ref, b3_ref,
                       o_ref, xbuf, brbuf, acc_ref, sem):
    """grid = (N, n_h_tiles); batch axis parallel, row axis sequential.

    x_hbm    : (N, H_hal, W_hal, Cin_p)    zero-ring-padded input, left in HBM
    u_ref    : (H+2, W_hal, SS)            padded bilinear upsample operator
    ycat_ref : (1, SS, NS*Cout_p)          pooled branch features (per batch)
    w3x_ref  : (9, Cin_p, Cout_p)          3x3 weights, rows for the x channels
    w3b_ref  : (9, NS*Cout_p, Cout_p)      3x3 weights, rows for branch channels
    b3_ref   : (1, Cout_p)                 bias (f32)
    o_ref    : (1, TH, W, Cout_p)          output row tile
    xbuf     : (2, TH+2, W_hal, Cin_p)     double-buffered x halo windows
    brbuf    : (TH+2, W_hal, NS*Cout_p)    upsampled branch features (this tile)
    acc_ref  : (3, TH*W_hal, Cout_p) f32   per-dx accumulators
    """
    n = pl.program_id(0)
    i = pl.program_id(1)
    n_rows = th + 2
    rows = th * w_hal
    slot = i & 1

    def start_fetch(tile, slot_idx):
        r0 = pl.multiple_of(tile * th, th)
        pltpu.make_async_copy(x_hbm.at[n, pl.ds(r0, n_rows)],
                              xbuf.at[slot_idx], sem.at[slot_idx]).start()

    @pl.when(i == 0)
    def _prime():
        start_fetch(0, 0)

    @pl.when(i + 1 < pl.num_programs(1))
    def _prefetch():                       # next row tile into the other slot
        start_fetch(i + 1, 1 - slot)

    # Bilinear upsampling of the pooled branches for this halo window runs
    # while the x DMA is in flight.  ycat is block-diagonal over scales, so one
    # matmul yields the channel-concatenated branch features.
    row0 = pl.multiple_of(i * th, th)
    ss = u_ref.shape[-1]
    u_win = u_ref[pl.ds(row0, n_rows)]                       # (TH+2, W_hal, SS)
    br = jnp.dot(u_win.reshape(n_rows * w_hal, ss), ycat_ref[0],
                 preferred_element_type=jnp.float32)
    brbuf[...] = br.reshape(n_rows, w_hal, nscout_p).astype(brbuf.dtype)

    # wait for this tile's x halo window
    pltpu.make_async_copy(x_hbm.at[n, pl.ds(0, n_rows)],
                          xbuf.at[slot], sem.at[slot]).wait()

    # 3x3 conv as 9 taps = 18 matmuls over contiguous full-width slabs (the dy
    # shift is a cheap major-axis slice; the dx column shift is applied once
    # per dx on the small Cout-wide accumulators in the epilogue).
    for dy in range(3):
        x_slab = xbuf[slot, dy:dy + th].reshape(rows, cin_p)
        b_slab = brbuf[dy:dy + th].reshape(rows, nscout_p)
        for dx in range(3):
            t = dy * 3 + dx
            p = jnp.dot(x_slab, w3x_ref[t], preferred_element_type=jnp.float32)
            p = p + jnp.dot(b_slab, w3b_ref[t],
                            preferred_element_type=jnp.float32)
            if dy == 0:
                acc_ref[dx] = p
            else:
                acc_ref[dx] += p

    out = acc_ref[0].reshape(th, w_hal, cout_p)[:, 0:w, :]
    out = out + acc_ref[1].reshape(th, w_hal, cout_p)[:, 1:1 + w, :]
    out = out + acc_ref[2].reshape(th, w_hal, cout_p)[:, 2:2 + w, :]
    o_ref[0] = jnp.maximum(out + b3_ref[...], 0.0).astype(o_ref.dtype)


# ----------------------------------------------------------------------------
# PSPNet wrapper
# ----------------------------------------------------------------------------
class PSPNetPallas:
    def __init__(self, in_channels, channels, H, W, pool_scales=(1, 2, 3, 6),
                 align_corners=False, key=None, matmul_dtype=jnp.bfloat16,
                 pool_rows=None, h_tile=None):
        # PyTorch-module defaults: input_transform=None, in_index=-1,
        # norm_cfg=None (=> conv bias=True), act_cfg=ReLU.
        self.in_index = -1
        self.Cin, self.Cout = int(in_channels), int(channels)
        self.H, self.W = int(H), int(W)
        self.scales = tuple(pool_scales)
        self.NS = len(self.scales)
        self.mdt = matmul_dtype
        self._single_buffer_ok = True

        self.Cin_p = _round_up(self.Cin, LANE)
        self.Cout_p = _round_up(self.Cout, LANE)
        self.W_hal = _round_up(self.W + 2, 8)      # halo width, sublane aligned
        self.H_hal = _round_up(self.H + 2, 8)      # halo height (extra zero rows)

        # row layout of the stacked pooled tensor: one 8-aligned block per scale
        offs, pads, off = [], [], 0
        for s in self.scales:
            offs.append(off)
            pads.append(_round_up(s * s, 8))
            off += pads[-1]
        self.ss_off, self.ss_pad, self.SS = offs, pads, off

        self.h_tile = self._pick_h_tile(h_tile)         # kernel B row tile
        self.rh = self._pick_pool_rows(pool_rows)       # kernel A row chunk
        n_chunks = self.H_hal // self.rh

        # pooling operator (stacked, padded layout) and padded upsample operator
        P_pad = np.zeros((self.SS, self.H_hal, self.W_hal), np.float32)
        U_hal = np.zeros((self.H + 2, self.W_hal, self.SS), np.float32)
        self.P_ref, self.U_ref = [], []
        for s, o in zip(self.scales, offs):
            Ps = np.kron(adaptive_pool_matrix(self.H, s),
                         adaptive_pool_matrix(self.W, s))                    # (s*s, HW)
            Us = np.kron(bilinear_resize_matrix(s, self.H, align_corners),
                         bilinear_resize_matrix(s, self.W, align_corners))   # (HW, s*s)
            P_pad[o:o + s * s, 1:self.H + 1, 1:self.W + 1] = \
                Ps.reshape(s * s, self.H, self.W)
            U_hal[1:self.H + 1, 1:self.W + 1, o:o + s * s] = \
                Us.reshape(self.H, self.W, s * s)
            self.P_ref.append(jnp.asarray(Ps))
            self.U_ref.append(jnp.asarray(Us))
        P_chunks = (P_pad.reshape(self.SS, n_chunks, self.rh, self.W_hal)
                    .transpose(1, 0, 2, 3)
                    .reshape(n_chunks, self.SS, self.rh * self.W_hal))
        self.P_chunks = jnp.asarray(P_chunks).astype(matmul_dtype)
        self.U_hal = jnp.asarray(U_hal).astype(matmul_dtype)

        # deterministic synthetic parameters (shapes from the module __init__)
        if key is None:
            key = jax.random.PRNGKey(0)
        keys = jax.random.split(key, 2 * self.NS + 2)
        self.w1_list, self.b1_list = [], []
        for i in range(self.NS):
            self.w1_list.append(
                jax.random.normal(keys[2 * i], (self.Cin, self.Cout), jnp.float32)
                / np.sqrt(self.Cin))
            self.b1_list.append(
                jax.random.normal(keys[2 * i + 1], (self.Cout,), jnp.float32) * 0.1)
        Ctot = self.Cin + self.NS * self.Cout
        self.w3 = jax.random.normal(keys[-2], (3, 3, Ctot, self.Cout),
                                    jnp.float32) / np.sqrt(9 * Ctot)
        self.b3 = jax.random.normal(keys[-1], (self.Cout,), jnp.float32) * 0.1

        # channel-padded / repacked parameters used by the kernels
        W1p = np.zeros((self.NS, self.Cin_p, self.Cout_p), np.float32)
        B1p = np.zeros((self.NS, 1, self.Cout_p), np.float32)
        for i in range(self.NS):
            W1p[i, :self.Cin, :self.Cout] = np.asarray(self.w1_list[i])
            B1p[i, 0, :self.Cout] = np.asarray(self.b1_list[i])
        self.W1p = jnp.asarray(W1p).astype(matmul_dtype)
        self.B1p = jnp.asarray(B1p)                      # epilogue stays f32

        w3np = np.asarray(self.w3)
        W3x = np.zeros((9, self.Cin_p, self.Cout_p), np.float32)
        W3b = np.zeros((9, self.NS * self.Cout_p, self.Cout_p), np.float32)
        for dy in range(3):
            for dx in range(3):
                t = dy * 3 + dx
                W3x[t, :self.Cin, :self.Cout] = w3np[dy, dx, :self.Cin, :]
                for s in range(self.NS):
                    blk = w3np[dy, dx,
                               self.Cin + s * self.Cout:self.Cin + (s + 1) * self.Cout, :]
                    W3b[t, s * self.Cout_p:s * self.Cout_p + self.Cout, :self.Cout] = blk
        self.W3x = jnp.asarray(W3x).astype(matmul_dtype)
        self.W3b = jnp.asarray(W3b).astype(matmul_dtype)
        B3p = np.zeros((1, self.Cout_p), np.float32)
        B3p[0, :self.Cout] = np.asarray(self.b3)
        self.B3p = jnp.asarray(B3p)

    # ---- tile selection ------------------------------------------------------
    def _pick_h_tile(self, requested):
        if requested is not None:
            assert self.H % int(requested) == 0
            return int(requested)
        isz = np.dtype(self.mdt).itemsize
        NSC = self.NS * self.Cout_p
        budget = int(0.85 * _vmem_capacity())
        fixed = ((9 * self.Cin_p * self.Cout_p + 9 * NSC * self.Cout_p) * isz
                 + (self.H + 2) * self.W_hal * self.SS * isz
                 + 2 * self.SS * NSC * isz + self.Cout_p * 4)
        for t in (32, 16, 8, 4, 2, 1):
            if self.H % t:
                continue
            need = (fixed
                    + 2 * (t + 2) * self.W_hal * self.Cin_p * isz    # xbuf (2 slots)
                    + (t + 2) * self.W_hal * NSC * isz               # brbuf
                    + 3 * t * self.W_hal * self.Cout_p * 4           # accumulators
                    + 2 * t * self.W * self.Cout_p * 4)              # output blocks
            if need <= budget:
                return t
        return 1

    def _pick_pool_rows(self, requested):
        if requested is not None:
            assert self.H_hal % int(requested) == 0
            return int(requested)
        isz = np.dtype(self.mdt).itemsize
        best = 8
        for t in range(8, self.H_hal + 1, 8):
            if self.H_hal % t == 0 and t * self.W_hal * self.Cin_p * isz <= (8 << 20):
                best = t
        return best

    # ---- BlockSpec helpers ---------------------------------------------------
    @staticmethod
    def _cspec(shape, index_map, single_buffer):
        """Spec for grid-constant operands; single-buffered when supported."""
        if single_buffer:
            return pl.BlockSpec(shape, index_map, pipeline_mode=pl.Buffered(1))
        return pl.BlockSpec(shape, index_map)

    def _with_fallback(self, fn, *args):
        if self._single_buffer_ok:
            try:
                return fn(*args, single_buffer=True)
            except Exception:        # pl.Buffered(1) unsupported -> default buffering
                self._single_buffer_ok = False
        return fn(*args, single_buffer=False)

    # ---- Pallas calls --------------------------------------------------------
    def _ppm_call(self, x_halo, N, single_buffer):
        Cin_p, Cout_p, NS, SS = self.Cin_p, self.Cout_p, self.NS, self.SS
        RH, W_hal = self.rh, self.W_hal
        n_chunks = self.H_hal // RH
        isz = np.dtype(self.mdt).itemsize
        scale_info = tuple((o, p, s * s) for o, p, s
                           in zip(self.ss_off, self.ss_pad, self.scales))
        need = (2 * RH * W_hal * Cin_p * isz + 2 * SS * RH * W_hal * isz
                + 2 * NS * Cin_p * Cout_p * isz + 2 * NS * Cout_p * 4
                + 2 * SS * NS * Cout_p * isz + SS * Cin_p * 4)
        cost = pl.CostEstimate(
            flops=int(2 * N * n_chunks * SS * RH * W_hal * Cin_p
                      + 2 * N * SS * Cin_p * Cout_p),
            transcendentals=0,
            bytes_accessed=int(x_halo.size * isz + self.P_chunks.size * isz
                               + self.W1p.size * isz + N * SS * NS * Cout_p * isz))
        return pl.pallas_call(
            functools.partial(_ppm_pool_conv_kernel, scale_info, Cout_p),
            out_shape=jax.ShapeDtypeStruct((N, SS, NS * Cout_p), self.mdt),
            grid=(N, n_chunks),
            in_specs=[
                pl.BlockSpec((1, RH, W_hal, Cin_p), lambda n, j: (n, j, 0, 0)),
                pl.BlockSpec((1, SS, RH * W_hal), lambda n, j: (j, 0, 0)),
                self._cspec((NS, Cin_p, Cout_p), lambda n, j: (0, 0, 0),
                            single_buffer),
                self._cspec((NS, 1, Cout_p), lambda n, j: (0, 0, 0),
                            single_buffer),
            ],
            out_specs=pl.BlockSpec((1, SS, NS * Cout_p), lambda n, j: (n, 0, 0)),
            scratch_shapes=[pltpu.VMEM((SS, Cin_p), jnp.float32)],
            compiler_params=pltpu.CompilerParams(
                dimension_semantics=("parallel", "arbitrary"),
                vmem_limit_bytes=_vmem_limit(need)),
            cost_estimate=cost,
        )(x_halo, self.P_chunks, self.W1p, self.B1p)

    def _bottleneck_call(self, x_halo, ycat, N, single_buffer):
        H, W = self.H, self.W
        Cin_p, Cout_p, NS, SS = self.Cin_p, self.Cout_p, self.NS, self.SS
        TH, W_hal = self.h_tile, self.W_hal
        NSC = NS * Cout_p
        n_h = H // TH
        isz = np.dtype(self.mdt).itemsize
        need = ((H + 2) * W_hal * SS * isz + 2 * SS * NSC * isz
                + 2 * 9 * Cin_p * Cout_p * isz + 2 * 9 * NSC * Cout_p * isz
                + Cout_p * 4 + 2 * TH * W * Cout_p * 4
                + 2 * (TH + 2) * W_hal * Cin_p * isz
                + (TH + 2) * W_hal * NSC * isz
                + 3 * TH * W_hal * Cout_p * 4)
        cost = pl.CostEstimate(
            flops=int(N * n_h * (2 * (TH + 2) * W_hal * SS * NSC
                                 + 18 * TH * W_hal * (Cin_p + NSC) * Cout_p)),
            transcendentals=0,
            bytes_accessed=int(x_halo.size * isz + self.U_hal.size * isz
                               + ycat.size * isz + self.W3x.size * isz
                               + self.W3b.size * isz + N * H * W * Cout_p * 4))
        return pl.pallas_call(
            functools.partial(_bottleneck_kernel, TH, W, W_hal, Cin_p, NSC,
                              Cout_p),
            out_shape=jax.ShapeDtypeStruct((N, H, W, Cout_p), jnp.float32),
            grid=(N, n_h),
            in_specs=[
                pl.BlockSpec(memory_space=pl.ANY),                            # x_halo (HBM)
                self._cspec((H + 2, W_hal, SS), lambda n, i: (0, 0, 0),
                            single_buffer),                                   # U (resident)
                pl.BlockSpec((1, SS, NSC), lambda n, i: (n, 0, 0)),           # ycat
                self._cspec((9, Cin_p, Cout_p), lambda n, i: (0, 0, 0),
                            single_buffer),                                   # W3 (x rows)
                self._cspec((9, NSC, Cout_p), lambda n, i: (0, 0, 0),
                            single_buffer),                                   # W3 (branch rows)
                self._cspec((1, Cout_p), lambda n, i: (0, 0), single_buffer), # bias
            ],
            out_specs=pl.BlockSpec((1, TH, W, Cout_p), lambda n, i: (n, i, 0, 0)),
            scratch_shapes=[
                pltpu.VMEM((2, TH + 2, W_hal, Cin_p), self.mdt),   # x halo (2 slots)
                pltpu.VMEM((TH + 2, W_hal, NSC), self.mdt),        # branch features
                pltpu.VMEM((3, TH * W_hal, Cout_p), jnp.float32),  # per-dx accumulators
                pltpu.SemaphoreType.DMA((2,)),
            ],
            compiler_params=pltpu.CompilerParams(
                dimension_semantics=("parallel", "arbitrary"),
                vmem_limit_bytes=_vmem_limit(need)),
            cost_estimate=cost,
        )(x_halo, self.U_hal, ycat, self.W3x, self.W3b, self.B3p)

    # ---- Pallas forward ------------------------------------------------------
    def __call__(self, inputs):
        x = inputs[self.in_index]                  # (N, Cin, H, W); input_transform=None
        N, C, H, W = x.shape
        assert (C, H, W) == (self.Cin, self.H, self.W)

        # single combined NCHW->NHWC transpose + zero-ring / channel pad; this
        # padded layout feeds BOTH kernels (no separate x_flat materialization)
        x_halo = jnp.pad(
            jnp.transpose(x, (0, 2, 3, 1)).astype(self.mdt),
            ((0, 0), (1, self.H_hal - H - 1), (1, self.W_hal - W - 1),
             (0, self.Cin_p - C)))

        ycat = self._with_fallback(self._ppm_call, x_halo, N)
        out_p = self._with_fallback(self._bottleneck_call, x_halo, ycat, N)

        out = out_p[..., :self.Cout]               # drop channel padding
        return jnp.transpose(out, (0, 3, 1, 2))    # back to NCHW (module semantics)

    # ---- pure-JAX f32 reference (unpadded parameters, same module math) ------
    def reference(self, inputs):
        x = inputs[self.in_index]
        N, C, H, W = x.shape
        xf = jnp.transpose(x, (0, 2, 3, 1)).reshape(N, H * W, C).astype(jnp.float32)
        feats = [xf]
        for P, U, w, b in zip(self.P_ref, self.U_ref, self.w1_list, self.b1_list):
            pooled = jnp.einsum('pk,nkc->npc', P, xf)
            y = jnp.maximum(jnp.einsum('npc,cd->npd', pooled, w) + b, 0.0)
            feats.append(jnp.einsum('kp,npd->nkd', U, y))
        feats = jnp.concatenate(feats, axis=-1).reshape(N, H, W, -1)
        fpad = jnp.pad(feats, ((0, 0), (1, 1), (1, 1), (0, 0)))
        out = jnp.zeros((N, H, W, self.Cout), jnp.float32) + self.b3
        for dy in range(3):
            for dx in range(3):
                out = out + jnp.einsum('nhwc,cd->nhwd',
                                       fpad[:, dy:dy + H, dx:dx + W, :],
                                       self.w3[dy, dx])
        out = jnp.maximum(out, 0.0)
        return jnp.transpose(out, (0, 3, 1, 2))


# TODO(synk): torch.utils.checkpoint (use_checkpoint=True training path) and the
# 'resize_concat'/'multiple_select' input transforms are not exercised by the
# default-constructed module and are not implemented here.

if __name__ == "__main__":
    key = jax.random.PRNGKey(0)
    kx, kaux, kp = jax.random.split(key, 3)

    N, Cin, H, W = 2, 4, 16, 16
    channels = 8

    x = jax.random.normal(kx, (N, Cin, H, W), jnp.float32)
    aux = jax.random.normal(kaux, (N, Cin, H // 2, W // 2), jnp.float32)
    inputs = [aux, x]          # in_index=-1 selects the last feature map

    # f32 matmuls: exact check against the pure-JAX reference; small tiles to
    # exercise the multi-chunk pooling reduction and the double-buffered halo DMA.
    model = PSPNetPallas(in_channels=Cin, channels=channels, H=H, W=W,
                         pool_scales=(1, 2, 3, 6), align_corners=False, key=kp,
                         matmul_dtype=jnp.float32, pool_rows=8, h_tile=8)
    out = jax.block_until_ready(model(inputs))
    assert out.shape == (N, channels, H, W), out.shape
    ref = model.reference(inputs)
    np.testing.assert_allclose(np.asarray(out), np.asarray(ref), rtol=2e-3, atol=2e-3)

    # default configuration: bf16 matmul operands (f32 accumulation / epilogue),
    # auto-picked tiles; looser tolerance against the f32 reference.
    model_bf16 = PSPNetPallas(in_channels=Cin, channels=channels, H=H, W=W,
                              pool_scales=(1, 2, 3, 6), align_corners=False, key=kp)
    out_bf16 = jax.block_until_ready(model_bf16(inputs))
    np.testing.assert_allclose(np.asarray(out_bf16), np.asarray(ref),
                               rtol=5e-2, atol=5e-2)

    print("KERNEL_OK")
</pallas_src>

<mosaic_0001>
module attributes {stable_mosaic.version = 11 : i64} {
  func.func @_ppm_pool_conv_kernel(%arg0: i32, %arg1: i32, %arg2: memref<1x8x24x128xf32, #tpu.memory_space<vmem>>, %arg3: memref<1x72x192xf32, #tpu.memory_space<vmem>>, %arg4: memref<4x128x128xf32, #tpu.memory_space<vmem>>, %arg5: memref<4x1x128xf32, #tpu.memory_space<vmem>>, %arg6: memref<1x72x512xf32, #tpu.memory_space<vmem>>, %arg7: memref<72x128xf32, #tpu.memory_space<vmem>>) attributes {dimension_semantics = [#tpu.dimension_semantics<parallel>, #tpu.dimension_semantics<arbitrary>], iteration_bounds = array<i64: 2, 3>, scalar_prefetch = 0 : i64, scratch_operands = 1 : i64, tpu.core_type = #tpu.core_type<tc>, window_params = [{transform_indices = @transform_0, window_bounds = array<i64: 1, 8, 24, 128>}, {transform_indices = @transform_1, window_bounds = array<i64: 1, 72, 192>}, {pipeline_mode = #tpu.pipeline_mode<synchronous>, transform_indices = @transform_2, window_bounds = array<i64: 4, 128, 128>}, {pipeline_mode = #tpu.pipeline_mode<synchronous>, transform_indices = @transform_3, window_bounds = array<i64: 4, 1, 128>}, {transform_indices = @transform_4, window_bounds = array<i64: 1, 72, 512>}]} {
    %c0_i32 = arith.constant 0 : i32
    %0 = arith.cmpi eq, %arg1, %c0_i32 : i32
    %1 = arith.extui %0 : i1 to i32
    %c0_i32_0 = arith.constant 0 : i32
    %2 = arith.cmpi ne, %1, %c0_i32_0 : i32
    scf.if %2 {
      %cst_12 = arith.constant 0.000000e+00 : f32
      %15 = vector.broadcast %cst_12 : f32 to vector<72x128xf32>
      %c0_13 = arith.constant 0 : index
      %c0_14 = arith.constant 0 : index
      %16 = vector.load %arg7[%c0_13, %c0_14] : memref<72x128xf32, #tpu.memory_space<vmem>>, vector<72x128xf32>
      tpu.vector_store %arg7[%c0_13, %c0_14], %15 {strides = array<i32>} : memref<72x128xf32, #tpu.memory_space<vmem>>, vector<72x128xf32>,
    } else {
    }
    %c0 = arith.constant 0 : index
    %c0_1 = arith.constant 0 : index
    %c0_2 = arith.constant 0 : index
    %c0_3 = arith.constant 0 : index
    %3 = vector.load %arg2[%c0, %c0_1, %c0_2, %c0_3] : memref<1x8x24x128xf32, #tpu.memory_space<vmem>>, vector<1x8x24x128xf32>
    %4 = vector.shape_cast %3 : vector<1x8x24x128xf32> to vector<8x24x128xf32>
    %5 = vector.shape_cast %4 : vector<8x24x128xf32> to vector<192x128xf32>
    %c0_4 = arith.constant 0 : index
    %c0_5 = arith.constant 0 : index
    %6 = vector.load %arg7[%c0_4, %c0_5] : memref<72x128xf32, #tpu.memory_space<vmem>>, vector<72x128xf32>
    %c0_6 = arith.constant 0 : index
    %c0_7 = arith.constant 0 : index
    %c0_8 = arith.constant 0 : index
    %7 = vector.load %arg3[%c0_6, %c0_7, %c0_8] : memref<1x72x192xf32, #tpu.memory_space<vmem>>, vector<1x72x192xf32>
    %8 = vector.shape_cast %7 : vector<1x72x192xf32> to vector<72x192xf32>
    %cst = arith.constant dense<0.000000e+00> : vector<72x128xf32>
    %9 = tpu.matmul %8, %5, %cst {dimension_numbers = #tpu.dot_dimension_numbers<[1], [0], [0], [1], [0, 0, 1, 1], [], []>} : vector<72x192xf32>, vector<192x128xf32>, vector<72x128xf32> -> vector<72x128xf32>
    %10 = arith.addf %6, %9 : vector<72x128xf32>
    %c0_9 = arith.constant 0 : index
    %c0_10 = arith.constant 0 : index
    %11 = vector.load %arg7[%c0_9, %c0_10] : memref<72x128xf32, #tpu.memory_space<vmem>>, vector<72x128xf32>
    tpu.vector_store %arg7[%c0_9, %c0_10], %10 {strides = array<i32>} : memref<72x128xf32, #tpu.memory_space<vmem>>, vector<72x128xf32>,
    %c2_i32 = arith.constant 2 : i32
    %12 = arith.cmpi eq, %arg1, %c2_i32 : i32
    %13 = arith.extui %12 : i1 to i32
    %c0_i32_11 = arith.constant 0 : i32
    %14 = arith.cmpi ne, %13, %c0_i32_11 : i32
    scf.if %14 {
      %cst_12 = arith.constant 0.000000e+00 : f32
      %15 = vector.broadcast %cst_12 : f32 to vector<72x512xf32>
      %c0_13 = arith.constant 0 : index
      %c0_14 = arith.constant 0 : index
      %c0_15 = arith.constant 0 : index
      %16 = vector.load %arg6[%c0_13, %c0_14, %c0_15] : memref<1x72x512xf32, #tpu.memory_space<vmem>>, vector<1x72x512xf32>
      %17 = vector.shape_cast %16 : vector<1x72x512xf32> to vector<72x512xf32>
      %18 = vector.shape_cast %15 : vector<72x512xf32> to vector<1x72x512xf32>
      tpu.vector_store %arg6[%c0_13, %c0_14, %c0_15], %18 {strides = array<i32>} : memref<1x72x512xf32, #tpu.memory_space<vmem>>, vector<1x72x512xf32>,
      %c0_16 = arith.constant 0 : index
      %c0_17 = arith.constant 0 : index
      %19 = vector.load %arg7[%c0_16, %c0_17] : memref<72x128xf32, #tpu.memory_space<vmem>>, vector<8x128xf32>
      %c0_18 = arith.constant 0 : index
      %c0_19 = arith.constant 0 : index
      %c0_20 = arith.constant 0 : index
      %20 = vector.load %arg4[%c0_18, %c0_19, %c0_20] : memref<4x128x128xf32, #tpu.memory_space<vmem>>, vector<1x128x128xf32>
      %21 = vector.shape_cast %20 : vector<1x128x128xf32> to vector<128x128xf32>
      %cst_21 = arith.constant dense<0.000000e+00> : vector<8x128xf32>
      %22 = tpu.matmul %19, %21, %cst_21 {dimension_numbers = #tpu.dot_dimension_numbers<[1], [0], [0], [1], [0, 0, 1, 1], [], []>} : vector<8x128xf32>, vector<128x128xf32>, vector<8x128xf32> -> vector<8x128xf32>
      %c0_22 = arith.constant 0 : index
      %c0_23 = arith.constant 0 : index
      %c0_24 = arith.constant 0 : index
      %23 = vector.load %arg5[%c0_22, %c0_23, %c0_24] : memref<4x1x128xf32, #tpu.memory_space<vmem>>, vector<1x1x128xf32>
      %24 = vector.shape_cast %23 : vector<1x1x128xf32> to vector<1x128xf32>
      %25 = vector.broadcast %24 : vector<1x128xf32> to vector<8x128xf32>
      %26 = arith.addf %22, %25 : vector<8x128xf32>
      %cst_25 = arith.constant 0.000000e+00 : f32
      %27 = vector.broadcast %cst_25 : f32 to vector<8x128xf32>
      %28 = arith.maximumf %26, %27 : vector<8x128xf32>
      %29 = tpu.iota {dimensions = array<i32: 0>} : vector<8x128xi32>
      %c1_i32 = arith.constant 1 : i32
      %30 = vector.broadcast %c1_i32 : i32 to vector<8x128xi32>
      %31 = arith.cmpi slt, %29, %30 : vector<8x128xi32>
      %cst_26 = arith.constant 0.000000e+00 : f32
      %32 = vector.broadcast %cst_26 : f32 to vector<8x128xf32>
      %33 = arith.select %31, %28, %32 : vector<8x128xi1>, vector<8x128xf32>
      %c0_27 = arith.constant 0 : index
      %c0_28 = arith.constant 0 : index
      %c0_29 = arith.constant 0 : index
      %34 = vector.load %arg6[%c0_27, %c0_28, %c0_29] : memref<1x72x512xf32, #tpu.memory_space<vmem>>, vector<1x8x128xf32>
      %35 = vector.shape_cast %34 : vector<1x8x128xf32> to vector<8x128xf32>
      %36 = vector.shape_cast %33 : vector<8x128xf32> to vector<1x8x128xf32>
      tpu.vector_store %arg6[%c0_27, %c0_28, %c0_29], %36 {strides = array<i32>} : memref<1x72x512xf32, #tpu.memory_space<vmem>>, vector<1x8x128xf32>,
      %c8 = arith.constant 8 : index
      %c0_30 = arith.constant 0 : index
      %37 = vector.load %arg7[%c8, %c0_30] : memref<72x128xf32, #tpu.memory_space<vmem>>, vector<8x128xf32>
      %c1 = arith.constant 1 : index
      %c0_31 = arith.constant 0 : index
      %c0_32 = arith.constant 0 : index
      %38 = vector.load %arg4[%c1, %c0_31, %c0_32] : memref<4x128x128xf32, #tpu.memory_space<vmem>>, vector<1x128x128xf32>
      %39 = vector.shape_cast %38 : vector<1x128x128xf32> to vector<128x128xf32>
      %cst_33 = arith.constant dense<0.000000e+00> : vector<8x128xf32>
      %40 = tpu.matmul %37, %39, %cst_33 {dimension_numbers = #tpu.dot_dimension_numbers<[1], [0], [0], [1], [0, 0, 1, 1], [], []>} : vector<8x128xf32>, vector<128x128xf32>, vector<8x128xf32> -> vector<8x128xf32>
      %c1_34 = arith.constant 1 : index
      %c0_35 = arith.constant 0 : index
      %c0_36 = arith.constant 0 : index
      %41 = vector.load %arg5[%c1_34, %c0_35, %c0_36] : memref<4x1x128xf32, #tpu.memory_space<vmem>>, vector<1x1x128xf32>
      %42 = vector.shape_cast %41 : vector<1x1x128xf32> to vector<1x128xf32>
      %43 = vector.broadcast %42 : vector<1x128xf32> to vector<8x128xf32>
      %44 = arith.addf %40, %43 : vector<8x128xf32>
      %cst_37 = arith.constant 0.000000e+00 : f32
      %45 = vector.broadcast %cst_37 : f32 to vector<8x128xf32>
      %46 = arith.maximumf %44, %45 : vector<8x128xf32>
      %47 = tpu.iota {dimensions = array<i32: 0>} : vector<8x128xi32>
      %c4_i32 = arith.constant 4 : i32
      %48 = vector.broadcast %c4_i32 : i32 to vector<8x128xi32>
      %49 = arith.cmpi slt, %47, %48 : vector<8x128xi32>
      %cst_38 = arith.constant 0.000000e+00 : f32
      %50 = vector.broadcast %cst_38 : f32 to vector<8x128xf32>
      %51 = arith.select %49, %46, %50 : vector<8x128xi1>, vector<8x128xf32>
      %c0_39 = arith.constant 0 : index
      %c8_40 = arith.constant 8 : index
      %c128 = arith.constant 128 : index
      %52 = vector.load %arg6[%c0_39, %c8_40, %c128] : memref<1x72x512xf32, #tpu.memory_space<vmem>>, vector<1x8x128xf32>
      %53 = vector.shape_cast %52 : vector<1x8x128xf32> to vector<8x128xf32>
      %54 = vector.shape_cast %51 : vector<8x128xf32> to vector<1x8x128xf32>
      tpu.vector_store %arg6[%c0_39, %c8_40, %c128], %54 {strides = array<i32>} : memref<1x72x512xf32, #tpu.memory_space<vmem>>, vector<1x8x128xf32>,
      %c16 = arith.constant 16 : index
      %c0_41 = arith.constant 0 : index
      %55 = vector.load %arg7[%c16, %c0_41] : memref<72x128xf32, #tpu.memory_space<vmem>>, vector<16x128xf32>
      %c2 = arith.constant 2 : index
      %c0_42 = arith.constant 0 : index
      %c0_43 = arith.constant 0 : index
      %56 = vector.load %arg4[%c2, %c0_42, %c0_43] : memref<4x128x128xf32, #tpu.memory_space<vmem>>, vector<1x128x128xf32>
      %57 = vector.shape_cast %56 : vector<1x128x128xf32> to vector<128x128xf32>
      %cst_44 = arith.constant dense<0.000000e+00> : vector<16x128xf32>
      %58 = tpu.matmul %55, %57, %cst_44 {dimension_numbers = #tpu.dot_dimension_numbers<[1], [0], [0], [1], [0, 0, 1, 1], [], []>} : vector<16x128xf32>, vector<128x128xf32>, vector<16x128xf32> -> vector<16x128xf32>
      %c2_45 = arith.constant 2 : index
      %c0_46 = arith.constant 0 : index
      %c0_47 = arith.constant 0 : index
      %59 = vector.load %arg5[%c2_45, %c0_46, %c0_47] : memref<4x1x128xf32, #tpu.memory_space<vmem>>, vector<1x1x128xf32>
      %60 = vector.shape_cast %59 : vector<1x1x128xf32> to vector<1x128xf32>
      %61 = vector.broadcast %60 : vector<1x128xf32> to vector<16x128xf32>
      %62 = arith.addf %58, %61 : vector<16x128xf32>
      %cst_48 = arith.constant 0.000000e+00 : f32
      %63 = vector.broadcast %cst_48 : f32 to vector<16x128xf32>
      %64 = arith.maximumf %62, %63 : vector<16x128xf32>
      %65 = tpu.iota {dimensions = array<i32: 0>} : vector<16x128xi32>
      %c9_i32 = arith.constant 9 : i32
      %66 = vector.broadcast %c9_i32 : i32 to vector<16x128xi32>
      %67 = arith.cmpi slt, %65, %66 : vector<16x128xi32>
      %cst_49 = arith.constant 0.000000e+00 : f32
      %68 = vector.broadcast %cst_49 : f32 to vector<16x128xf32>
      %69 = arith.select %67, %64, %68 : vector<16x128xi1>, vector<16x128xf32>
      %c0_50 = arith.constant 0 : index
      %c16_51 = arith.constant 16 : index
      %c256 = arith.constant 256 : index
      %70 = vector.load %arg6[%c0_50, %c16_51, %c256] : memref<1x72x512xf32, #tpu.memory_space<vmem>>, vector<1x16x128xf32>
      %71 = vector.shape_cast %70 : vector<1x16x128xf32> to vector<16x128xf32>
      %72 = vector.shape_cast %69 : vector<16x128xf32> to vector<1x16x128xf32>
      tpu.vector_store %arg6[%c0_50, %c16_51, %c256], %72 {strides = array<i32>} : memref<1x72x512xf32, #tpu.memory_space<vmem>>, vector<1x16x128xf32>,
      %c32 = arith.constant 32 : index
      %c0_52 = arith.constant 0 : index
      %73 = vector.load %arg7[%c32, %c0_52] : memref<72x128xf32, #tpu.memory_space<vmem>>, vector<40x128xf32>
      %c3 = arith.constant 3 : index
      %c0_53 = arith.constant 0 : index
      %c0_54 = arith.constant 0 : index
      %74 = vector.load %arg4[%c3, %c0_53, %c0_54] : memref<4x128x128xf32, #tpu.memory_space<vmem>>, vector<1x128x128xf32>
      %75 = vector.shape_cast %74 : vector<1x128x128xf32> to vector<128x128xf32>
      %cst_55 = arith.constant dense<0.000000e+00> : vector<40x128xf32>
      %76 = tpu.matmul %73, %75, %cst_55 {dimension_numbers = #tpu.dot_dimension_numbers<[1], [0], [0], [1], [0, 0, 1, 1], [], []>} : vector<40x128xf32>, vector<128x128xf32>, vector<40x128xf32> -> vector<40x128xf32>
      %c3_56 = arith.constant 3 : index
      %c0_57 = arith.constant 0 : index
      %c0_58 = arith.constant 0 : index
      %77 = vector.load %arg5[%c3_56, %c0_57, %c0_58] : memref<4x1x128xf32, #tpu.memory_space<vmem>>, vector<1x1x128xf32>
      %78 = vector.shape_cast %77 : vector<1x1x128xf32> to vector<1x128xf32>
      %79 = vector.broadcast %78 : vector<1x128xf32> to vector<40x128xf32>
      %80 = arith.addf %76, %79 : vector<40x128xf32>
      %cst_59 = arith.constant 0.000000e+00 : f32
      %81 = vector.broadcast %cst_59 : f32 to vector<40x128xf32>
      %82 = arith.maximumf %80, %81 : vector<40x128xf32>
      %83 = tpu.iota {dimensions = array<i32: 0>} : vector<40x128xi32>
      %c36_i32 = arith.constant 36 : i32
      %84 = vector.broadcast %c36_i32 : i32 to vector<40x128xi32>
      %85 = arith.cmpi slt, %83, %84 : vector<40x128xi32>
      %cst_60 = arith.constant 0.000000e+00 : f32
      %86 = vector.broadcast %cst_60 : f32 to vector<40x128xf32>
      %87 = arith.select %85, %82, %86 : vector<40x128xi1>, vector<40x128xf32>
      %c0_61 = arith.constant 0 : index
      %c32_62 = arith.constant 32 : index
      %c384 = arith.constant 384 : index
      %88 = vector.load %arg6[%c0_61, %c32_62, %c384] : memref<1x72x512xf32, #tpu.memory_space<vmem>>, vector<1x40x128xf32>
      %89 = vector.shape_cast %88 : vector<1x40x128xf32> to vector<40x128xf32>
      %90 = vector.shape_cast %87 : vector<40x128xf32> to vector<1x40x128xf32>
      tpu.vector_store %arg6[%c0_61, %c32_62, %c384], %90 {strides = array<i32>} : memref<1x72x512xf32, #tpu.memory_space<vmem>>, vector<1x40x128xf32>,
    } else {
    }
    return
  }
  func.func @transform_0(%arg0: i32, %arg1: i32) -> (i32, i32, i32, i32) {
    %c0_i32 = arith.constant 0 : i32
    %c0_i32_0 = arith.constant 0 : i32
    %c0_i32_1 = arith.constant 0 : i32
    return %arg0, %arg1, %c0_i32, %c0_i32_0 : i32, i32, i32, i32
  }
  func.func @transform_1(%arg0: i32, %arg1: i32) -> (i32, i32, i32) {
    %c0_i32 = arith.constant 0 : i32
    %c0_i32_0 = arith.constant 0 : i32
    %c0_i32_1 = arith.constant 0 : i32
    return %arg1, %c0_i32, %c0_i32_0 : i32, i32, i32
  }
  func.func @transform_2(%arg0: i32, %arg1: i32) -> (i32, i32, i32) {
    %c0_i32 = arith.constant 0 : i32
    %c0_i32_0 = arith.constant 0 : i32
    %c0_i32_1 = arith.constant 0 : i32
    %c0_i32_2 = arith.constant 0 : i32
    return %c0_i32, %c0_i32_0, %c0_i32_1 : i32, i32, i32
  }
  func.func @transform_3(%arg0: i32, %arg1: i32) -> (i32, i32, i32) {
    %c0_i32 = arith.constant 0 : i32
    %c0_i32_0 = arith.constant 0 : i32
    %c0_i32_1 = arith.constant 0 : i32
    %c0_i32_2 = arith.constant 0 : i32
    return %c0_i32, %c0_i32_0, %c0_i32_1 : i32, i32, i32
  }
  func.func @transform_4(%arg0: i32, %arg1: i32) -> (i32, i32, i32) {
    %c0_i32 = arith.constant 0 : i32
    %c0_i32_0 = arith.constant 0 : i32
    %c0_i32_1 = arith.constant 0 : i32
    return %arg0, %c0_i32, %c0_i32_0 : i32, i32, i32
  }
}

module attributes {stable_mosaic.version = 11 : i64} {
  func.func @_ppm_pool_conv_kernel(%arg0: i32, %arg1: i32, %arg2: memref<1x8x24x128xf32, #tpu.memory_space<vmem>>, %arg3: memref<1x72x192xf32, #tpu.memory_space<vmem>>, %arg4: memref<4x128x128xf32, #tpu.memory_space<vmem>>, %arg5: memref<4x1x128xf32, #tpu.memory_space<vmem>>, %arg6: memref<1x72x512xf32, #tpu.memory_space<vmem>>, %arg7: memref<72x128xf32, #tpu.memory_space<vmem>>) attributes {dimension_semantics = [#tpu.dimension_semantics<parallel>, #tpu.dimension_semantics<arbitrary>], iteration_bounds = array<i64: 2, 3>, scalar_prefetch = 0 : i64, scratch_operands = 1 : i64, tpu.core_type = #tpu.core_type<tc>, window_params = [{transform_indices = @transform_0, window_bounds = array<i64: 1, 8, 24, 128>}, {transform_indices = @transform_1, window_bounds = array<i64: 1, 72, 192>}, {pipeline_mode = #tpu.pipeline_mode<synchronous>, transform_indices = @transform_2, window_bounds = array<i64: 4, 128, 128>}, {pipeline_mode = #tpu.pipeline_mode<synchronous>, transform_indices = @transform_3, window_bounds = array<i64: 4, 1, 128>}, {transform_indices = @transform_4, window_bounds = array<i64: 1, 72, 512>}]} {
    %c0_i32 = arith.constant 0 : i32
    %0 = arith.cmpi eq, %arg1, %c0_i32 : i32
    %1 = arith.extui %0 : i1 to i32
    %c0_i32_0 = arith.constant 0 : i32
    %2 = arith.cmpi ne, %1, %c0_i32_0 : i32
    scf.if %2 {
      %cst_12 = arith.constant 0.000000e+00 : f32
      %15 = vector.broadcast %cst_12 : f32 to vector<72x128xf32>
      %c0_13 = arith.constant 0 : index
      %c0_14 = arith.constant 0 : index
      %16 = vector.load %arg7[%c0_13, %c0_14] : memref<72x128xf32, #tpu.memory_space<vmem>>, vector<72x128xf32>
      tpu.vector_store %arg7[%c0_13, %c0_14], %15 {strides = array<i32>} : memref<72x128xf32, #tpu.memory_space<vmem>>, vector<72x128xf32>,
    } else {
    }
    %c0 = arith.constant 0 : index
    %c0_1 = arith.constant 0 : index
    %c0_2 = arith.constant 0 : index
    %c0_3 = arith.constant 0 : index
    %3 = vector.load %arg2[%c0, %c0_1, %c0_2, %c0_3] : memref<1x8x24x128xf32, #tpu.memory_space<vmem>>, vector<1x8x24x128xf32>
    %4 = vector.shape_cast %3 : vector<1x8x24x128xf32> to vector<8x24x128xf32>
    %5 = vector.shape_cast %4 : vector<8x24x128xf32> to vector<192x128xf32>
    %c0_4 = arith.constant 0 : index
    %c0_5 = arith.constant 0 : index
    %6 = vector.load %arg7[%c0_4, %c0_5] : memref<72x128xf32, #tpu.memory_space<vmem>>, vector<72x128xf32>
    %c0_6 = arith.constant 0 : index
    %c0_7 = arith.constant 0 : index
    %c0_8 = arith.constant 0 : index
    %7 = vector.load %arg3[%c0_6, %c0_7, %c0_8] : memref<1x72x192xf32, #tpu.memory_space<vmem>>, vector<1x72x192xf32>
    %8 = vector.shape_cast %7 : vector<1x72x192xf32> to vector<72x192xf32>
    %cst = arith.constant dense<0.000000e+00> : vector<72x128xf32>
    %9 = tpu.matmul %8, %5, %cst {dimension_numbers = #tpu.dot_dimension_numbers<[1], [0], [0], [1], [0, 0, 1, 1], [], []>} : vector<72x192xf32>, vector<192x128xf32>, vector<72x128xf32> -> vector<72x128xf32>
    %10 = arith.addf %6, %9 : vector<72x128xf32>
    %c0_9 = arith.constant 0 : index
    %c0_10 = arith.constant 0 : index
    %11 = vector.load %arg7[%c0_9, %c0_10] : memref<72x128xf32, #tpu.memory_space<vmem>>, vector<72x128xf32>
    tpu.vector_store %arg7[%c0_9, %c0_10], %10 {strides = array<i32>} : memref<72x128xf32, #tpu.memory_space<vmem>>, vector<72x128xf32>,
    %c2_i32 = arith.constant 2 : i32
    %12 = arith.cmpi eq, %arg1, %c2_i32 : i32
    %13 = arith.extui %12 : i1 to i32
    %c0_i32_11 = arith.constant 0 : i32
    %14 = arith.cmpi ne, %13, %c0_i32_11 : i32
    scf.if %14 {
      %cst_12 = arith.constant 0.000000e+00 : f32
      %15 = vector.broadcast %cst_12 : f32 to vector<72x512xf32>
      %c0_13 = arith.constant 0 : index
      %c0_14 = arith.constant 0 : index
      %c0_15 = arith.constant 0 : index
      %16 = vector.load %arg6[%c0_13, %c0_14, %c0_15] : memref<1x72x512xf32, #tpu.memory_space<vmem>>, vector<1x72x512xf32>
      %17 = vector.shape_cast %16 : vector<1x72x512xf32> to vector<72x512xf32>
      %18 = vector.shape_cast %15 : vector<72x512xf32> to vector<1x72x512xf32>
      tpu.vector_store %arg6[%c0_13, %c0_14, %c0_15], %18 {strides = array<i32>} : memref<1x72x512xf32, #tpu.memory_space<vmem>>, vector<1x72x512xf32>,
      %c0_16 = arith.constant 0 : index
      %c0_17 = arith.constant 0 : index
      %19 = vector.load %arg7[%c0_16, %c0_17] : memref<72x128xf32, #tpu.memory_space<vmem>>, vector<8x128xf32>
      %c0_18 = arith.constant 0 : index
      %c0_19 = arith.constant 0 : index
      %c0_20 = arith.constant 0 : index
      %20 = vector.load %arg4[%c0_18, %c0_19, %c0_20] : memref<4x128x128xf32, #tpu.memory_space<vmem>>, vector<1x128x128xf32>
      %21 = vector.shape_cast %20 : vector<1x128x128xf32> to vector<128x128xf32>
      %cst_21 = arith.constant dense<0.000000e+00> : vector<8x128xf32>
      %22 = tpu.matmul %19, %21, %cst_21 {dimension_numbers = #tpu.dot_dimension_numbers<[1], [0], [0], [1], [0, 0, 1, 1], [], []>} : vector<8x128xf32>, vector<128x128xf32>, vector<8x128xf32> -> vector<8x128xf32>
      %c0_22 = arith.constant 0 : index
      %c0_23 = arith.constant 0 : index
      %c0_24 = arith.constant 0 : index
      %23 = vector.load %arg5[%c0_22, %c0_23, %c0_24] : memref<4x1x128xf32, #tpu.memory_space<vmem>>, vector<1x1x128xf32>
      %24 = vector.shape_cast %23 : vector<1x1x128xf32> to vector<1x128xf32>
      %25 = vector.broadcast %24 : vector<1x128xf32> to vector<8x128xf32>
      %26 = arith.addf %22, %25 : vector<8x128xf32>
      %cst_25 = arith.constant 0.000000e+00 : f32
      %27 = vector.broadcast %cst_25 : f32 to vector<8x128xf32>
      %28 = arith.maximumf %26, %27 : vector<8x128xf32>
      %29 = tpu.iota {dimensions = array<i32: 0>} : vector<8x128xi32>
      %c1_i32 = arith.constant 1 : i32
      %30 = vector.broadcast %c1_i32 : i32 to vector<8x128xi32>
      %31 = arith.cmpi slt, %29, %30 : vector<8x128xi32>
      %cst_26 = arith.constant 0.000000e+00 : f32
      %32 = vector.broadcast %cst_26 : f32 to vector<8x128xf32>
      %33 = arith.select %31, %28, %32 : vector<8x128xi1>, vector<8x128xf32>
      %c0_27 = arith.constant 0 : index
      %c0_28 = arith.constant 0 : index
      %c0_29 = arith.constant 0 : index
      %34 = vector.load %arg6[%c0_27, %c0_28, %c0_29] : memref<1x72x512xf32, #tpu.memory_space<vmem>>, vector<1x8x128xf32>
      %35 = vector.shape_cast %34 : vector<1x8x128xf32> to vector<8x128xf32>
      %36 = vector.shape_cast %33 : vector<8x128xf32> to vector<1x8x128xf32>
      tpu.vector_store %arg6[%c0_27, %c0_28, %c0_29], %36 {strides = array<i32>} : memref<1x72x512xf32, #tpu.memory_space<vmem>>, vector<1x8x128xf32>,
      %c8 = arith.constant 8 : index
      %c0_30 = arith.constant 0 : index
      %37 = vector.load %arg7[%c8, %c0_30] : memref<72x128xf32, #tpu.memory_space<vmem>>, vector<8x128xf32>
      %c1 = arith.constant 1 : index
      %c0_31 = arith.constant 0 : index
      %c0_32 = arith.constant 0 : index
      %38 = vector.load %arg4[%c1, %c0_31, %c0_32] : memref<4x128x128xf32, #tpu.memory_space<vmem>>, vector<1x128x128xf32>
      %39 = vector.shape_cast %38 : vector<1x128x128xf32> to vector<128x128xf32>
      %cst_33 = arith.constant dense<0.000000e+00> : vector<8x128xf32>
      %40 = tpu.matmul %37, %39, %cst_33 {dimension_numbers = #tpu.dot_dimension_numbers<[1], [0], [0], [1], [0, 0, 1, 1], [], []>} : vector<8x128xf32>, vector<128x128xf32>, vector<8x128xf32> -> vector<8x128xf32>
      %c1_34 = arith.constant 1 : index
      %c0_35 = arith.constant 0 : index
      %c0_36 = arith.constant 0 : index
      %41 = vector.load %arg5[%c1_34, %c0_35, %c0_36] : memref<4x1x128xf32, #tpu.memory_space<vmem>>, vector<1x1x128xf32>
      %42 = vector.shape_cast %41 : vector<1x1x128xf32> to vector<1x128xf32>
      %43 = vector.broadcast %42 : vector<1x128xf32> to vector<8x128xf32>
      %44 = arith.addf %40, %43 : vector<8x128xf32>
      %cst_37 = arith.constant 0.000000e+00 : f32
      %45 = vector.broadcast %cst_37 : f32 to vector<8x128xf32>
      %46 = arith.maximumf %44, %45 : vector<8x128xf32>
      %47 = tpu.iota {dimensions = array<i32: 0>} : vector<8x128xi32>
      %c4_i32 = arith.constant 4 : i32
      %48 = vector.broadcast %c4_i32 : i32 to vector<8x128xi32>
      %49 = arith.cmpi slt, %47, %48 : vector<8x128xi32>
      %cst_38 = arith.constant 0.000000e+00 : f32
      %50 = vector.broadcast %cst_38 : f32 to vector<8x128xf32>
      %51 = arith.select %49, %46, %50 : vector<8x128xi1>, vector<8x128xf32>
      %c0_39 = arith.constant 0 : index
      %c8_40 = arith.constant 8 : index
      %c128 = arith.constant 128 : index
      %52 = vector.load %arg6[%c0_39, %c8_40, %c128] : memref<1x72x512xf32, #tpu.memory_space<vmem>>, vector<1x8x128xf32>
      %53 = vector.shape_cast %52 : vector<1x8x128xf32> to vector<8x128xf32>
      %54 = vector.shape_cast %51 : vector<8x128xf32> to vector<1x8x128xf32>
      tpu.vector_store %arg6[%c0_39, %c8_40, %c128], %54 {strides = array<i32>} : memref<1x72x512xf32, #tpu.memory_space<vmem>>, vector<1x8x128xf32>,
      %c16 = arith.constant 16 : index
      %c0_41 = arith.constant 0 : index
      %55 = vector.load %arg7[%c16, %c0_41] : memref<72x128xf32, #tpu.memory_space<vmem>>, vector<16x128xf32>
      %c2 = arith.constant 2 : index
      %c0_42 = arith.constant 0 : index
      %c0_43 = arith.constant 0 : index
      %56 = vector.load %arg4[%c2, %c0_42, %c0_43] : memref<4x128x128xf32, #tpu.memory_space<vmem>>, vector<1x128x128xf32>
      %57 = vector.shape_cast %56 : vector<1x128x128xf32> to vector<128x128xf32>
      %cst_44 = arith.constant dense<0.000000e+00> : vector<16x128xf32>
      %58 = tpu.matmul %55, %57, %cst_44 {dimension_numbers = #tpu.dot_dimension_numbers<[1], [0], [0], [1], [0, 0, 1, 1], [], []>} : vector<16x128xf32>, vector<128x128xf32>, vector<16x128xf32> -> vector<16x128xf32>
      %c2_45 = arith.constant 2 : index
      %c0_46 = arith.constant 0 : index
      %c0_47 = arith.constant 0 : index
      %59 = vector.load %arg5[%c2_45, %c0_46, %c0_47] : memref<4x1x128xf32, #tpu.memory_space<vmem>>, vector<1x1x128xf32>
      %60 = vector.shape_cast %59 : vector<1x1x128xf32> to vector<1x128xf32>
      %61 = vector.broadcast %60 : vector<1x128xf32> to vector<16x128xf32>
      %62 = arith.addf %58, %61 : vector<16x128xf32>
      %cst_48 = arith.constant 0.000000e+00 : f32
      %63 = vector.broadcast %cst_48 : f32 to vector<16x128xf32>
      %64 = arith.maximumf %62, %63 : vector<16x128xf32>
      %65 = tpu.iota {dimensions = array<i32: 0>} : vector<16x128xi32>
      %c9_i32 = arith.constant 9 : i32
      %66 = vector.broadcast %c9_i32 : i32 to vector<16x128xi32>
      %67 = arith.cmpi slt, %65, %66 : vector<16x128xi32>
      %cst_49 = arith.constant 0.000000e+00 : f32
      %68 = vector.broadcast %cst_49 : f32 to vector<16x128xf32>
      %69 = arith.select %67, %64, %68 : vector<16x128xi1>, vector<16x128xf32>
      %c0_50 = arith.constant 0 : index
      %c16_51 = arith.constant 16 : index
      %c256 = arith.constant 256 : index
      %70 = vector.load %arg6[%c0_50, %c16_51, %c256] : memref<1x72x512xf32, #tpu.memory_space<vmem>>, vector<1x16x128xf32>
      %71 = vector.shape_cast %70 : vector<1x16x128xf32> to vector<16x128xf32>
      %72 = vector.shape_cast %69 : vector<16x128xf32> to vector<1x16x128xf32>
      tpu.vector_store %arg6[%c0_50, %c16_51, %c256], %72 {strides = array<i32>} : memref<1x72x512xf32, #tpu.memory_space<vmem>>, vector<1x16x128xf32>,
      %c32 = arith.constant 32 : index
      %c0_52 = arith.constant 0 : index
      %73 = vector.load %arg7[%c32, %c0_52] : memref<72x128xf32, #tpu.memory_space<vmem>>, vector<40x128xf32>
      %c3 = arith.constant 3 : index
      %c0_53 = arith.constant 0 : index
      %c0_54 = arith.constant 0 : index
      %74 = vector.load %arg4[%c3, %c0_53, %c0_54] : memref<4x128x128xf32, #tpu.memory_space<vmem>>, vector<1x128x128xf32>
      %75 = vector.shape_cast %74 : vector<1x128x128xf32> to vector<128x128xf32>
      %cst_55 = arith.constant dense<0.000000e+00> : vector<40x128xf32>
      %76 = tpu.matmul %73, %75, %cst_55 {dimension_numbers = #tpu.dot_dimension_numbers<[1], [0], [0], [1], [0, 0, 1, 1], [], []>} : vector<40x128xf32>, vector<128x128xf32>, vector<40x128xf32> -> vector<40x128xf32>
      %c3_56 = arith.constant 3 : index
      %c0_57 = arith.constant 0 : index
      %c0_58 = arith.constant 0 : index
      %77 = vector.load %arg5[%c3_56, %c0_57, %c0_58] : memref<4x1x128xf32, #tpu.memory_space<vmem>>, vector<1x1x128xf32>
      %78 = vector.shape_cast %77 : vector<1x1x128xf32> to vector<1x128xf32>
      %79 = vector.broadcast %78 : vector<1x128xf32> to vector<40x128xf32>
      %80 = arith.addf %76, %79 : vector<40x128xf32>
      %cst_59 = arith.constant 0.000000e+00 : f32
      %81 = vector.broadcast %cst_59 : f32 to vector<40x128xf32>
      %82 = arith.maximumf %80, %81 : vector<40x128xf32>
      %83 = tpu.iota {dimensions = array<i32: 0>} : vector<40x128xi32>
      %c36_i32 = arith.constant 36 : i32
      %84 = vector.broadcast %c36_i32 : i32 to vector<40x128xi32>
      %85 = arith.cmpi slt, %83, %84 : vector<40x128xi32>
      %cst_60 = arith.constant 0.000000e+00 : f32
      %86 = vector.broadcast %cst_60 : f32 to vector<40x128xf32>
      %87 = arith.select %85, %82, %86 : vector<40x128xi1>, vector<40x128xf32>
      %c0_61 = arith.constant 0 : index
      %c32_62 = arith.constant 32 : index
      %c384 = arith.constant 384 : index
      %88 = vector.load %arg6[%c0_61, %c32_62, %c384] : memref<1x72x512xf32, #tpu.memory_space<vmem>>, vector<1x40x128xf32>
      %89 = vector.shape_cast %88 : vector<1x40x128xf32> to vector<40x128xf32>
      %90 = vector.shape_cast %87 : vector<40x128xf32> to vector<1x40x128xf32>
      tpu.vector_store %arg6[%c0_61, %c32_62, %c384], %90 {strides = array<i32>} : memref<1x72x512xf32, #tpu.memory_space<vmem>>, vector<1x40x128xf32>,
    } else {
    }
    return
  }
  func.func @transform_0(%arg0: i32, %arg1: i32) -> (i32, i32, i32, i32) {
    %c0_i32 = arith.constant 0 : i32
    %c0_i32_0 = arith.constant 0 : i32
    %c0_i32_1 = arith.constant 0 : i32
    return %arg0, %arg1, %c0_i32, %c0_i32_0 : i32, i32, i32, i32
  }
  func.func @transform_1(%arg0: i32, %arg1: i32) -> (i32, i32, i32) {
    %c0_i32 = arith.constant 0 : i32
    %c0_i32_0 = arith.constant 0 : i32
    %c0_i32_1 = arith.constant 0 : i32
    return %arg1, %c0_i32, %c0_i32_0 : i32, i32, i32
  }
  func.func @transform_2(%arg0: i32, %arg1: i32) -> (i32, i32, i32) {
    %c0_i32 = arith.constant 0 : i32
    %c0_i32_0 = arith.constant 0 : i32
    %c0_i32_1 = arith.constant 0 : i32
    %c0_i32_2 = arith.constant 0 : i32
    return %c0_i32, %c0_i32_0, %c0_i32_1 : i32, i32, i32
  }
  func.func @transform_3(%arg0: i32, %arg1: i32) -> (i32, i32, i32) {
    %c0_i32 = arith.constant 0 : i32
    %c0_i32_0 = arith.constant 0 : i32
    %c0_i32_1 = arith.constant 0 : i32
    %c0_i32_2 = arith.constant 0 : i32
    return %c0_i32, %c0_i32_0, %c0_i32_1 : i32, i32, i32
  }
  func.func @transform_4(%arg0: i32, %arg1: i32) -> (i32, i32, i32) {
    %c0_i32 = arith.constant 0 : i32
    %c0_i32_0 = arith.constant 0 : i32
    %c0_i32_1 = arith.constant 0 : i32
    return %arg0, %c0_i32, %c0_i32_0 : i32, i32, i32
  }
}

</mosaic_0001>

<llo_original>
// kernel: tpu_custom_call.1
$region0: #{tpu_custom_call.1}
  #allocation0 [shape = 'u32[]', space=smem, size = 0x4, offset = 0x4, fixed_abs, tag = 'smem constant byte address 0x4 - core index']
  #allocation1 [shape = 'u32[144,128]{1,0:T(1,128)}', space=vmem, size = 0x12000, scoped, tag = 'internal scratch']
  #allocation2 [shape = 'f32[72,128]{1,0:T(8,128)}', space=vmem, size = 0x9000, scoped, tag = 'scratch operand']
  %s0 = inlined_call_operand.hbm [shape: f32[2,24,24,128], index: 0, kind: input, shape index: {}]
  %s1 = inlined_call_operand.hbm [shape: f32[3,72,192], index: 1, kind: input, shape index: {}]
  %s2 = inlined_call_operand.hbm [shape: f32[4,128,128], index: 2, kind: input, shape index: {}]
  %s3 = inlined_call_operand.vmem [shape: f32[4,1,128], index: 3, kind: input, shape index: {}]
  %s4 = inlined_call_operand.hbm [shape: f32[2,72,512], index: 4, kind: output, shape index: {}]
  %s5 = sld [smem:[#allocation0]]
  $region69: #{tpu_custom_call.1} parent=0
    _
  %s7 = ssub.s32 1, %s5
  %s8 = scalar_select 0, %s7, %s5
  $region1: #{tpu_custom_call.1} parent=0
    #allocation3 [shape = 'u8[196608]{0}', space=vmem, size = 0x30000, scoped, tag = 'input window, operand 0']
    #allocation4 [shape = 's32[2]{0}', space=sflag, size = 0x8, scoped, tag = 'scoped memory for tpu_custom_call.1']
    #allocation5 [shape = 's32[2]{0}', space=sflag, size = 0x8, scoped, tag = 'scoped memory for tpu_custom_call.1']
    #allocation6 [shape = 'u8[147456]{0}', space=vmem, size = 0x24000, scoped, tag = 'input window, operand 1']
    #allocation7 [shape = 's32[2]{0}', space=sflag, size = 0x8, scoped, tag = 'scoped memory for tpu_custom_call.1']
    #allocation8 [shape = 'u8[262144]{0}', space=vmem, size = 0x40000, scoped, tag = 'input window, operand 2, single buffered']
    #allocation9 [shape = 'u8[294912]{0}', space=vmem, size = 0x48000, scoped, tag = 'output window, operand 0']
    %9 = vsyncpa [#allocation4], 0
    %s10 = scalar_lea.sflag [#allocation4], 1
    %11 = vsyncpa %s10, 0
    %12 = vsyncpa [#allocation7], 0
    %s13 = scalar_lea.sflag [#allocation7], 1
    %14 = vsyncpa %s13, 0
    %15 = vsyncpa [#allocation5], 0
    %s16 = scalar_lea.sflag [#allocation5], 1
    %17 = vsyncpa %s16, 0
    loop: start=0, step=1, limit=8
    $region2: #{tpu_custom_call.1} parent=1 // loop_pre_header
      _
    $region3: #{tpu_custom_call.1} parent=1 // loop_header
      %s19 = sphi 0, %s23
      %p20 = scmp.ge.s32.totalorder %s19, 8
      %s26 = sphi 0, %s38
      %s27 = sphi 0, %s34
      %s28 = sphi 0, %s26
      %s29 = sphi 0, %s27
      %s30 = sphi 0, %s28
      %s31 = sphi 0, %s29
      %s43 = sphi 0, %s45
      %s46 = sphi 0, %s43
      %s47 = sphi 0, %s46
      %s63 = sphi 0, %s47
      %s69 = sphi 0, %s71
      %s72 = sphi 0, %s69
      %s73 = sphi 0, %s72
      %s89 = sphi 0, %s73
      %s93 = sphi 0, %s93
      %s95 = sphi 0, %s93
      %s96 = sphi 0, %s95
      %s110 = sphi 0, %s96
      %s114 = sphi 0, %s114
      %s116 = sphi 0, %s114
      %s117 = sphi 0, %s116
      %s131 = sphi 0, %s117
      %s137 = sphi 0, %s139
      %s140 = sphi 0, %s137
      %s141 = sphi 0, %s140
      %s157 = sphi 0, %s141
    $region4: #{tpu_custom_call.1} parent=1 // loop_header_branch
      %22 = sbr.rel (%p20) target = $region8
    $region5: #{tpu_custom_call.1} parent=1 // loop_body
      %s24 = ssub.s32 %s19, 1
      %s25 = ssub.s32 %s19, 2
      %s32 = sadd.s32 1, %s27
      %p33 = scmp.ge.s32.totalorder %s32, 3
      %s34 = scalar_select %p33, 0, %s32
      %s35 = sadd.s32 1, %s26
      %s36 = scalar_select %p33, %s35, %s26
      %p37 = scmp.ge.s32.totalorder %s36, 2
      %s38 = scalar_select %p37, 0, %s36
      %s39 = ssub.s32 %s26, %s38
      %s40 = ssub.s32 %s27, %s34
      %s41 = sor.u32 %s39, %s40
      %p42 = scmp.eq.s32.totalorder %s41, 0
      %s44 = sadd.s32 %s43, 1
      %s45 = scalar_select %p42, %s43, %s44
      %p48 = pneg %p42
      %p49 = scmp.eq.s32.totalorder %s19, 5
      %p50 = por %p48, %p49
      %p51 = scmp.ne.s32.totalorder %s43, %s46
      %p52 = scmp.eq.s32.totalorder %s19, 0
      %p53 = por %p51, %p52
      %p54 = scmp.ne.s32.totalorder %s43, %s46
      %p55 = scmp.eq.s32.totalorder %s24, 5
      %p56 = por %p54, %p55
      %p57 = scmp.ne.s32.totalorder %s46, %s47
      %p58 = scmp.eq.s32.totalorder %s24, 0
      %p59 = por %p57, %p58
      %p60 = scmp.ne.s32.totalorder %s46, %s47
      %p61 = scmp.eq.s32.totalorder %s25, 5
      %p62 = por %p60, %p61
      %p64 = scmp.ne.s32.totalorder %s47, %s63
      %p65 = scmp.eq.s32.totalorder %s25, 0
      %p66 = por %p64, %p65
      %s67 = ssub.s32 %s27, %s34
      %p68 = scmp.eq.s32.totalorder %s67, 0
      %s70 = sadd.s32 %s69, 1
      %s71 = scalar_select %p68, %s69, %s70
      %p74 = pneg %p68
      %p75 = scmp.eq.s32.totalorder %s19, 5
      %p76 = por %p74, %p75
      %p77 = scmp.ne.s32.totalorder %s69, %s72
      %p78 = scmp.eq.s32.totalorder %s19, 0
      %p79 = por %p77, %p78
      %p80 = scmp.ne.s32.totalorder %s69, %s72
      %p81 = scmp.eq.s32.totalorder %s24, 5
      %p82 = por %p80, %p81
      %p83 = scmp.ne.s32.totalorder %s72, %s73
      %p84 = scmp.eq.s32.totalorder %s24, 0
      %p85 = por %p83, %p84
      %p86 = scmp.ne.s32.totalorder %s72, %s73
      %p87 = scmp.eq.s32.totalorder %s25, 5
      %p88 = por %p86, %p87
      %p90 = scmp.ne.s32.totalorder %s73, %s89
      %p91 = scmp.eq.s32.totalorder %s25, 0
      %p92 = por %p90, %p91
      %s94 = sadd.s32 %s93, 1
      %p97 = scmp.eq.s32.totalorder %s19, 5
      %p98 = scmp.ne.s32.totalorder %s93, %s95
      %p99 = scmp.eq.s32.totalorder %s19, 0
      %p100 = por %p98, %p99
      %p101 = scmp.ne.s32.totalorder %s93, %s95
      %p102 = scmp.eq.s32.totalorder %s24, 5
      %p103 = por %p101, %p102
      %p104 = scmp.ne.s32.totalorder %s95, %s96
      %p105 = scmp.eq.s32.totalorder %s24, 0
      %p106 = por %p104, %p105
      %p107 = scmp.ne.s32.totalorder %s95, %s96
      %p108 = scmp.eq.s32.totalorder %s25, 5
      %p109 = por %p107, %p108
      %p111 = scmp.ne.s32.totalorder %s96, %s110
      %p112 = scmp.eq.s32.totalorder %s25, 0
      %p113 = por %p111, %p112
      %s115 = sadd.s32 %s114, 1
      %p118 = scmp.eq.s32.totalorder %s19, 5
      %p119 = scmp.ne.s32.totalorder %s114, %s116
      %p120 = scmp.eq.s32.totalorder %s19, 0
      %p121 = por %p119, %p120
      %p122 = scmp.ne.s32.totalorder %s114, %s116
      %p123 = scmp.eq.s32.totalorder %s24, 5
      %p124 = por %p122, %p123
      %p125 = scmp.ne.s32.totalorder %s116, %s117
      %p126 = scmp.eq.s32.totalorder %s24, 0
      %p127 = por %p125, %p126
      %p128 = scmp.ne.s32.totalorder %s116, %s117
      %p129 = scmp.eq.s32.totalorder %s25, 5
      %p130 = por %p128, %p129
      %p132 = scmp.ne.s32.totalorder %s117, %s131
      %p133 = scmp.eq.s32.totalorder %s25, 0
      %p134 = por %p132, %p133
      %s135 = ssub.s32 %s26, %s38
      %p136 = scmp.eq.s32.totalorder %s135, 0
      %s138 = sadd.s32 %s137, 1
      %s139 = scalar_select %p136, %s137, %s138
      %p142 = pneg %p136
      %p143 = scmp.eq.s32.totalorder %s19, 5
      %p144 = por %p142, %p143
      %p145 = scmp.ne.s32.totalorder %s137, %s140
      %p146 = scmp.eq.s32.totalorder %s19, 0
      %p147 = por %p145, %p146
      %p148 = scmp.ne.s32.totalorder %s137, %s140
      %p149 = scmp.eq.s32.totalorder %s24, 5
      %p150 = por %p148, %p149
      %p151 = scmp.ne.s32.totalorder %s140, %s141
      %p152 = scmp.eq.s32.totalorder %s24, 0
      %p153 = por %p151, %p152
      %p154 = scmp.ne.s32.totalorder %s140, %s141
      %p155 = scmp.eq.s32.totalorder %s25, 5
      %p156 = por %p154, %p155
      %p158 = scmp.ne.s32.totalorder %s141, %s157
      %p159 = scmp.eq.s32.totalorder %s25, 0
      %p160 = por %p158, %p159
      %p161 = scmp.le.s32.totalorder 1, %s19
      %p162 = scmp.lt.s32.totalorder %s19, 7
      %p163 = pnand %p161, %p162
      %p164 = pneg %p163
      // Predicated region
      $region9: #{tpu_custom_call.1} parent=5 // pred_check
        _
      $region10: #{tpu_custom_call.1} parent=5 // pred_check_branch
        %166 = sbr.rel (%p163) target = $region12
      $region11: #{tpu_custom_call.1} parent=5 // pred_region
        %s167 = ssub.s32 %s19, 1
        // Predicated region
        $region13: #{tpu_custom_call.1} parent=11 // pred_check
          %p168 = pneg %p106
        $region14: #{tpu_custom_call.1} parent=11 // pred_check_branch
          %170 = sbr.rel (%p168) target = $region16
        $region15: #{tpu_custom_call.1} parent=11 // pred_region
          %s172 = ssub.s32 8192, 8192
          %173 = vsyncadd [#allocation7], %s172
          %s174 = sshll.u32 [#allocation8], 4
          %s175 = int_to_ptr.vmem [resolvable:$true] %s174
          %180 = dma.hbm_to_vmem [thread:$0]  %s2, 8192, %s175, [#allocation7], 128, 128, 8
        $region16: #{tpu_custom_call.1} parent=11 // pred_fallthru
          _
        // Predicated region
        $region17: #{tpu_custom_call.1} parent=11 // pred_check
          %p181 = pneg %p127
        $region18: #{tpu_custom_call.1} parent=11 // pred_check_branch
          %183 = sbr.rel (%p181) target = $region20
        $region19: #{tpu_custom_call.1} parent=11 // pred_region
          _
        $region20: #{tpu_custom_call.1} parent=11 // pred_fallthru
          _
      $region12: #{tpu_custom_call.1} parent=5 // pred_fallthru
        _
      %p184 = scmp.lt.s32.totalorder %s19, 6
      // Predicated region
      $region21: #{tpu_custom_call.1} parent=5 // pred_check
        %p185 = pneg %p184
      $region22: #{tpu_custom_call.1} parent=5 // pred_check_branch
        %187 = sbr.rel (%p185) target = $region24
      $region23: #{tpu_custom_call.1} parent=5 // pred_region
        // Predicated region
        $region25: #{tpu_custom_call.1} parent=23 // pred_check
          %p188 = pneg %p53
        $region26: #{tpu_custom_call.1} parent=23 // pred_check_branch
          %190 = sbr.rel (%p188) target = $region28
        $region27: #{tpu_custom_call.1} parent=23 // pred_region
          %s191 = sand.u32 %s43, 1
          %s192 = scalar_lea.sflag [#allocation4], %s191
          %s193 = sand.u32 %s43, 1
          %s194 = smul.addr %s193, 192
          %s195 = scalar_lea.vmem [#allocation3], %s194
          %s196 = smul.u32 8, %s27
          %s198 = ssub.s32 3072, 3072
          %199 = vsyncadd %s192, %s198
          %s200 = smul.addr %s196, 3
          %s201 = smul.addr %s26, 72
          %s202 = sadd.s32 %s200, %s201
          %s203 = smul.addr %s202, 128
          %s204 = scalar_lea.hbm %s0, %s203
          %s205 = sshll.u32 %s195, 4
          %s206 = int_to_ptr.vmem [resolvable:$true] %s205
          %211 = dma.hbm_to_vmem [thread:$0]  %s204, 3072, %s206, %s192, 128, 128, 8
        $region28: #{tpu_custom_call.1} parent=23 // pred_fallthru
          _
        // Predicated region
        $region29: #{tpu_custom_call.1} parent=23 // pred_check
          %p212 = pneg %p79
        $region30: #{tpu_custom_call.1} parent=23 // pred_check_branch
          %214 = sbr.rel (%p212) target = $region32
        $region31: #{tpu_custom_call.1} parent=23 // pred_region
          %s215 = sand.u32 %s19, 1
          %s216 = scalar_lea.sflag [#allocation7], %s215
          %s217 = sand.u32 %s69, 1
          %s218 = smul.addr %s217, 144
          %s219 = scalar_lea.vmem [#allocation6], %s218
          %s221 = ssub.s32 2304, 2304
          %222 = vsyncadd %s216, %s221
          %s223 = smul.addr %s27, 18
          %s224 = smul.addr %s223, 128
          %s225 = scalar_lea.hbm %s1, %s224
          %s226 = sshll.u32 %s219, 4
          %s227 = int_to_ptr.vmem [resolvable:$true] %s226
          %232 = dma.hbm_to_vmem [thread:$0]  %s225, 2304, %s227, %s216, 256, 256, 16
        $region32: #{tpu_custom_call.1} parent=23 // pred_fallthru
          _
      $region24: #{tpu_custom_call.1} parent=5 // pred_fallthru
        _
      %p233 = scmp.le.s32.totalorder 1, %s19
      %p234 = scmp.lt.s32.totalorder %s19, 7
      %p235 = pnand %p233, %p234
      %p236 = pneg %p235
      // Predicated region
      $region33: #{tpu_custom_call.1} parent=5 // pred_check
        _
      $region34: #{tpu_custom_call.1} parent=5 // pred_check_branch
        %238 = sbr.rel (%p235) target = $region36
      $region35: #{tpu_custom_call.1} parent=5 // pred_region
        %s239 = ssub.s32 %s19, 1
        %s240 = sand.u32 %s46, 1
        %s241 = scalar_lea.sflag [#allocation4], %s240
        %s242 = sand.u32 %s46, 1
        %s243 = smul.addr %s242, 192
        %s244 = scalar_lea.vmem [#allocation3], %s243
        // Predicated region
        $region37: #{tpu_custom_call.1} parent=35 // pred_check
          %p245 = pneg %p59
        $region38: #{tpu_custom_call.1} parent=35 // pred_check_branch
          %247 = sbr.rel (%p245) target = $region40
        $region39: #{tpu_custom_call.1} parent=35 // pred_region
          %248 = dma.done %s241, 3072
        $region40: #{tpu_custom_call.1} parent=35 // pred_fallthru
          _
        %s249 = sand.u32 %s24, 1
        %s250 = scalar_lea.sflag [#allocation7], %s249
        %s251 = sand.u32 %s72, 1
        %s252 = smul.addr %s251, 144
        %s253 = scalar_lea.vmem [#allocation6], %s252
        // Predicated region
        $region41: #{tpu_custom_call.1} parent=35 // pred_check
          %p254 = pneg %p85
        $region42: #{tpu_custom_call.1} parent=35 // pred_check_branch
          %256 = sbr.rel (%p254) target = $region44
        $region43: #{tpu_custom_call.1} parent=35 // pred_region
          %257 = dma.done %s250, 2304
        $region44: #{tpu_custom_call.1} parent=35 // pred_fallthru
          _
        // Predicated region
        $region45: #{tpu_custom_call.1} parent=35 // pred_check
          %p258 = pneg %p106
        $region46: #{tpu_custom_call.1} parent=35 // pred_check_branch
          %260 = sbr.rel (%p258) target = $region48
        $region47: #{tpu_custom_call.1} parent=35 // pred_region
          %261 = dma.done [#allocation7], 8192
        $region48: #{tpu_custom_call.1} parent=35 // pred_fallthru
          _
        %s262 = sand.u32 %s46, 1
        %s263 = scalar_lea.sflag [#allocation4], %s262
        %s264 = sand.u32 %s46, 1
        %s265 = smul.addr %s264, 192
        %s266 = scalar_lea.vmem [#allocation3], %s265
        %p267 = pneg %p59
        %p268 = pneg %p56
        %s269 = sand.u32 %s24, 1
        %s270 = scalar_lea.sflag [#allocation7], %s269
        %s271 = sand.u32 %s72, 1
        %s272 = smul.addr %s271, 144
        %s273 = scalar_lea.vmem [#allocation6], %s272
        %p274 = pneg %p85
        %p275 = pneg %p82
        %p276 = pneg %p106
        %p277 = pneg %p103
        %p278 = pneg %p127
        %p279 = pneg %p124
        %p280 = pneg %p153
        %p281 = pneg %p150
        %s282 = sand.u32 %s140, 1
        %s283 = scalar_lea.sflag [#allocation5], %s282
        %s284 = sand.u32 %s140, 1
        %s285 = smul.addr %s284, 288
        %s286 = scalar_lea.vmem [#allocation9], %s285
        %s287 = smul.u32 8, %s29
        %p288 = scmp.eq.s32.totalorder %s29, 0
        // Predicated region
        $region49: #{tpu_custom_call.1} parent=35 // pred_check
          %p289 = pneg %p288
        $region50: #{tpu_custom_call.1} parent=35 // pred_check_branch
          %291 = sbr.rel (%p289) target = $region52
        $region51: #{tpu_custom_call.1} parent=35 // pred_region
          %292 = vst [vmem:[#allocation2] sm:$0xff] 0.0
          %293 = vst [vmem:[#allocation2 + $0x8] sm:$0xff] 0.0
          %294 = vst [vmem:[#allocation2 + $0x10] sm:$0xff] 0.0
          %295 = vst [vmem:[#allocation2 + $0x18] sm:$0xff] 0.0
          %296 = vst [vmem:[#allocation2 + $0x20] sm:$0xff] 0.0
          %297 = vst [vmem:[#allocation2 + $0x28] sm:$0xff] 0.0
          %298 = vst [vmem:[#allocation2 + $0x30] sm:$0xff] 0.0
          %299 = vst [vmem:[#allocation2 + $0x38] sm:$0xff] 0.0
          %300 = vst [vmem:[#allocation2 + $0x40] sm:$0xff] 0.0
        $region52: #{tpu_custom_call.1} parent=35 // pred_fallthru
          _
        %v301 = vld [vmem:[%s244] sm:$0xff]
        %v302 = vld [vmem:[%s244 + $0x8] sm:$0xff]
        %v303 = vld [vmem:[%s244 + $0x10] sm:$0xff]
        %v304 = vld [vmem:[%s244 + $0x18] sm:$0xff]
        %v305 = vld [vmem:[%s244 + $0x20] sm:$0xff]
        %v306 = vld [vmem:[%s244 + $0x28] sm:$0xff]
        %v307 = vld [vmem:[%s244 + $0x30] sm:$0xff]
        %v308 = vld [vmem:[%s244 + $0x38] sm:$0xff]
        %v309 = vld [vmem:[%s244 + $0x40] sm:$0xff]
        %v310 = vld [vmem:[%s244 + $0x48] sm:$0xff]
        %v311 = vld [vmem:[%s244 + $0x50] sm:$0xff]
        %v312 = vld [vmem:[%s244 + $0x58] sm:$0xff]
        %v313 = vld [vmem:[%s244 + $0x60] sm:$0xff]
        %v314 = vld [vmem:[%s244 + $0x68] sm:$0xff]
        %v315 = vld [vmem:[%s244 + $0x70] sm:$0xff]
        %v316 = vld [vmem:[%s244 + $0x78] sm:$0xff]
        %v317 = vld [vmem:[%s244 + $0x80] sm:$0xff]
        %v318 = vld [vmem:[%s244 + $0x88] sm:$0xff]
        %v319 = vld [vmem:[%s244 + $0x90] sm:$0xff]
        %v320 = vld [vmem:[%s244 + $0x98] sm:$0xff]
        %v321 = vld [vmem:[%s244 + $0xa0] sm:$0xff]
        %v322 = vld [vmem:[%s244 + $0xa8] sm:$0xff]
        %v323 = vld [vmem:[%s244 + $0xb0] sm:$0xff]
        %v324 = vld [vmem:[%s244 + $0xb8] sm:$0xff]
        %v325 = vld [vmem:[#allocation2] sm:$0xff]
        %v326 = vld [vmem:[#allocation2 + $0x8] sm:$0xff]
        %v327 = vld [vmem:[#allocation2 + $0x10] sm:$0xff]
        %v328 = vld [vmem:[#allocation2 + $0x18] sm:$0xff]
        %v329 = vld [vmem:[#allocation2 + $0x20] sm:$0xff]
        %v330 = vld [vmem:[#allocation2 + $0x28] sm:$0xff]
        %v331 = vld [vmem:[#allocation2 + $0x30] sm:$0xff]
        %v332 = vld [vmem:[#allocation2 + $0x38] sm:$0xff]
        %v333 = vld [vmem:[#allocation2 + $0x40] sm:$0xff]
        %v334 = vld [vmem:[%s253] sm:$0xff]
        %v335 = vld [vmem:[%s253 + $0x8] sm:$0xff]
        %v336 = vld [vmem:[%s253 + $0x10] sm:$0xff]
        %v337 = vld [vmem:[%s253 + $0x18] sm:$0xff]
        %v338 = vld [vmem:[%s253 + $0x20] sm:$0xff]
        %v339 = vld [vmem:[%s253 + $0x28] sm:$0xff]
        %v340 = vld [vmem:[%s253 + $0x30] sm:$0xff]
        %v341 = vld [vmem:[%s253 + $0x38] sm:$0xff]
        %v342 = vld [vmem:[%s253 + $0x40] sm:$0xff]
        %v343 = vld [vmem:[%s253 + $0x48] sm:$0xff]
        %v344 = vld [vmem:[%s253 + $0x50] sm:$0xff]
        %v345 = vld [vmem:[%s253 + $0x58] sm:$0xff]
        %v346 = vld [vmem:[%s253 + $0x60] sm:$0xff]
        %v347 = vld [vmem:[%s253 + $0x68] sm:$0xff]
        %v348 = vld [vmem:[%s253 + $0x70] sm:$0xff]
        %v349 = vld [vmem:[%s253 + $0x78] sm:$0xff]
        %v350 = vld [vmem:[%s253 + $0x80] sm:$0xff]
        %v351 = vld [vmem:[%s253 + $0x88] sm:$0xff]
        %vm352 = vcmask 523264
        %v354 = vsel %vm352, %v335, 0
        %v357 = vsel %vm352, %v337, 0
        %v360 = vsel %vm352, %v339, 0
        %v363 = vsel %vm352, %v341, 0
        %v366 = vsel %vm352, %v343, 0
        %v369 = vsel %vm352, %v345, 0
        %v372 = vsel %vm352, %v347, 0
        %v375 = vsel %vm352, %v349, 0
        %v378 = vsel %vm352, %v351, 0
        %380 = vmatprep.subr.mxu0 0.0
        %381 = vmatpush1.msra.mxu0 %v316
        %382 = vmatprep.subr.mxu0 0.0
        %383 = vmatpush1.msra.mxu0 %v315
        %384 = vmatprep.subr.mxu0 0.0
        %385 = vmatpush1.msra.mxu0 %v314
        %386 = vmatprep.subr.mxu0 0.0
        %387 = vmatpush1.msra.mxu0 %v313
        %388 = vmatprep.subr.mxu0 0.0
        %389 = vmatpush1.msra.mxu0 %v312
        %390 = vmatprep.subr.mxu0 0.0
        %391 = vmatpush1.msra.mxu0 %v311
        %392 = vmatprep.subr.mxu0 0.0
        %393 = vmatpush1.msra.mxu0 %v310
        %394 = vmatprep.subr.mxu0 0.0
        %395 = vmatpush1.msra.mxu0 %v309
        %396 = vmatprep.subr.mxu0 0.0
        %397 = vmatpush1.msra.mxu0 %v308
        %398 = vmatprep.subr.mxu0 0.0
        %399 = vmatpush1.msra.mxu0 %v307
        %400 = vmatprep.subr.mxu0 0.0
        %401 = vmatpush1.msra.mxu0 %v306
        %402 = vmatprep.subr.mxu0 0.0
        %403 = vmatpush1.msra.mxu0 %v305
        %404 = vmatprep.subr.mxu0 0.0
        %405 = vmatpush1.msra.mxu0 %v304
        %406 = vmatprep.subr.mxu0 0.0
        %407 = vmatpush1.msra.mxu0 %v303
        %408 = vmatprep.subr.mxu0 0.0
        %409 = vmatpush1.msra.mxu0 %v302
        %410 = vmatprep.subr.mxu0 0.0
        %411 = vmatpush1.msra.mxu0 %v301
        %412 = vmatprep.subr.mxu0 0.0
        %413 = vmatpush2.msra.mxu0 0.0
        %414 = vmatprep.subr.mxu0 0.0
        %415 = vmatpush2.msra.mxu0 0.0
        %416 = vmatprep.subr.mxu0 0.0
        %417 = vmatpush2.msra.mxu0 0.0
        %418 = vmatprep.subr.mxu0 0.0
        %419 = vmatpush2.msra.mxu0 0.0
        %420 = vmatprep.subr.mxu0 0.0
        %421 = vmatpush2.msra.mxu0 0.0
        %422 = vmatprep.subr.mxu0 0.0
        %423 = vmatpush2.msra.mxu0 0.0
        %424 = vmatprep.subr.mxu0 0.0
        %425 = vmatpush2.msra.mxu0 0.0
        %426 = vmatprep.subr.mxu0 0.0
        %427 = vmatpush2.msra.mxu0 0.0
        %428 = vmatprep.subr.mxu0 0.0
        %429 = vmatpush2.msra.mxu0 %v324
        %430 = vmatprep.subr.mxu0 0.0
        %431 = vmatpush2.msra.mxu0 %v323
        %432 = vmatprep.subr.mxu0 0.0
        %433 = vmatpush2.msra.mxu0 %v322
        %434 = vmatprep.subr.mxu0 0.0
        %435 = vmatpush2.msra.mxu0 %v321
        %436 = vmatprep.subr.mxu0 0.0
        %437 = vmatpush2.msra.mxu0 %v320
        %438 = vmatprep.subr.mxu0 0.0
        %439 = vmatpush2.msra.mxu0 %v319
        %440 = vmatprep.subr.mxu0 0.0
        %441 = vmatpush2.msra.mxu0 %v318
        %442 = vmatprep.subr.mxu0 0.0
        %443 = vmatpush2.msra.mxu0 %v317
        %444 = vmatprep.mubr.f32.mxu0 %v354
        %445 = vmatmul.mubr.f32.gmra.mxu0 %v334
        %v446 = vpop.f32.mrf.mxu0
        %v447 = vadd.f32 0.0, %v446
        %v448 = vpop.f32.mrf.mxu0
        %449 = vmatprep.mubr.f32.mxu0 %v357
        %450 = vmatmul.mubr.f32.gmra.mxu0 %v336
        %v451 = vpop.f32.mrf.mxu0
        %v452 = vadd.f32 0.0, %v451
        %v453 = vpop.f32.mrf.mxu0
        %454 = vmatprep.mubr.f32.mxu0 %v360
        %455 = vmatmul.mubr.f32.gmra.mxu0 %v338
        %v456 = vpop.f32.mrf.mxu0
        %v457 = vadd.f32 0.0, %v456
        %v458 = vpop.f32.mrf.mxu0
        %459 = vmatprep.mubr.f32.mxu0 %v363
        %460 = vmatmul.mubr.f32.gmra.mxu0 %v340
        %v461 = vpop.f32.mrf.mxu0
        %v462 = vadd.f32 0.0, %v461
        %v463 = vpop.f32.mrf.mxu0
        %464 = vmatprep.mubr.f32.mxu0 %v366
        %465 = vmatmul.mubr.f32.gmra.mxu0 %v342
        %v466 = vpop.f32.mrf.mxu0
        %v467 = vadd.f32 0.0, %v466
        %v468 = vpop.f32.mrf.mxu0
        %469 = vmatprep.mubr.f32.mxu0 %v369
        %470 = vmatmul.mubr.f32.gmra.mxu0 %v344
        %v471 = vpop.f32.mrf.mxu0
        %v472 = vadd.f32 0.0, %v471
        %v473 = vpop.f32.mrf.mxu0
        %474 = vmatprep.mubr.f32.mxu0 %v372
        %475 = vmatmul.mubr.f32.gmra.mxu0 %v346
        %v476 = vpop.f32.mrf.mxu0
        %v477 = vadd.f32 0.0, %v476
        %v478 = vpop.f32.mrf.mxu0
        %479 = vmatprep.mubr.f32.mxu0 %v375
        %480 = vmatmul.mubr.f32.gmra.mxu0 %v348
        %v481 = vpop.f32.mrf.mxu0
        %v482 = vadd.f32 0.0, %v481
        %v483 = vpop.f32.mrf.mxu0
        %484 = vmatprep.mubr.f32.mxu0 %v378
        %485 = vmatmul.mubr.f32.gmra.mxu0 %v350
        %v486 = vpop.f32.mrf.mxu0
        %v487 = vadd.f32 0.0, %v486
        %v488 = vpop.f32.mrf.mxu0
        %489 = vdwg.mxu0
        %v490 = vadd.f32 %v325, %v447
        %v491 = vadd.f32 %v326, %v452
        %v492 = vadd.f32 %v327, %v457
        %v493 = vadd.f32 %v328, %v462
        %v494 = vadd.f32 %v329, %v467
        %v495 = vadd.f32 %v330, %v472
        %v496 = vadd.f32 %v331, %v477
        %v497 = vadd.f32 %v332, %v482
        %v498 = vadd.f32 %v333, %v487
        %499 = vst [vmem:[#allocation2] sm:$0xff] %v490
        %500 = vst [vmem:[#allocation2 + $0x8] sm:$0xff] %v491
        %501 = vst [vmem:[#allocation2 + $0x10] sm:$0xff] %v492
        %502 = vst [vmem:[#allocation2 + $0x18] sm:$0xff] %v493
        %503 = vst [vmem:[#allocation2 + $0x20] sm:$0xff] %v494
        %504 = vst [vmem:[#allocation2 + $0x28] sm:$0xff] %v495
        %505 = vst [vmem:[#allocation2 + $0x30] sm:$0xff] %v496
        %506 = vst [vmem:[#allocation2 + $0x38] sm:$0xff] %v497
        %507 = vst [vmem:[#allocation2 + $0x40] sm:$0xff] %v498
        %p508 = scmp.eq.s32.totalorder %s29, 2
        // Predicated region
        $region53: #{tpu_custom_call.1} parent=35 // pred_check
          %p509 = pneg %p508
        $region54: #{tpu_custom_call.1} parent=35 // pred_check_branch
          %511 = sbr.rel (%p509) target = $region56
        $region55: #{tpu_custom_call.1} parent=35 // pred_region
          %512 = vst [vmem:[%s286] sm:$0xff] 0.0
          %513 = vst [vmem:[%s286 + $0x8] sm:$0xff] 0.0
          %514 = vst [vmem:[%s286 + $0x10] sm:$0xff] 0.0
          %515 = vst [vmem:[%s286 + $0x18] sm:$0xff] 0.0
          %516 = vst [vmem:[%s286 + $0x20] sm:$0xff] 0.0
          %517 = vst [vmem:[%s286 + $0x28] sm:$0xff] 0.0
          %518 = vst [vmem:[%s286 + $0x30] sm:$0xff] 0.0
          %519 = vst [vmem:[%s286 + $0x38] sm:$0xff] 0.0
          %520 = vst [vmem:[%s286 + $0x40] sm:$0xff] 0.0
          %521 = vst [vmem:[%s286 + $0x48] sm:$0xff] 0.0
          %522 = vst [vmem:[%s286 + $0x50] sm:$0xff] 0.0
          %523 = vst [vmem:[%s286 + $0x58] sm:$0xff] 0.0
          %524 = vst [vmem:[%s286 + $0x60] sm:$0xff] 0.0
          %525 = vst [vmem:[%s286 + $0x68] sm:$0xff] 0.0
          %526 = vst [vmem:[%s286 + $0x70] sm:$0xff] 0.0
          %527 = vst [vmem:[%s286 + $0x78] sm:$0xff] 0.0
          %528 = vst [vmem:[%s286 + $0x80] sm:$0xff] 0.0
          %529 = vst [vmem:[%s286 + $0x88] sm:$0xff] 0.0
          %530 = vst [vmem:[%s286 + $0x90] sm:$0xff] 0.0
          %531 = vst [vmem:[%s286 + $0x98] sm:$0xff] 0.0
          %532 = vst [vmem:[%s286 + $0xa0] sm:$0xff] 0.0
          %533 = vst [vmem:[%s286 + $0xa8] sm:$0xff] 0.0
          %534 = vst [vmem:[%s286 + $0xb0] sm:$0xff] 0.0
          %535 = vst [vmem:[%s286 + $0xb8] sm:$0xff] 0.0
          %536 = vst [vmem:[%s286 + $0xc0] sm:$0xff] 0.0
          %537 = vst [vmem:[%s286 + $0xc8] sm:$0xff] 0.0
          %538 = vst [vmem:[%s286 + $0xd0] sm:$0xff] 0.0
          %539 = vst [vmem:[%s286 + $0xd8] sm:$0xff] 0.0
          %540 = vst [vmem:[%s286 + $0xe0] sm:$0xff] 0.0
          %541 = vst [vmem:[%s286 + $0xe8] sm:$0xff] 0.0
          %542 = vst [vmem:[%s286 + $0xf0] sm:$0xff] 0.0
          %543 = vst [vmem:[%s286 + $0xf8] sm:$0xff] 0.0
          %544 = vst [vmem:[%s286 + $0x100] sm:$0xff] 0.0
          %545 = vst [vmem:[%s286 + $0x108] sm:$0xff] 0.0
          %546 = vst [vmem:[%s286 + $0x110] sm:$0xff] 0.0
          %547 = vst [vmem:[%s286 + $0x118] sm:$0xff] 0.0
          %v548 = vld [vmem:[#allocation2] sm:$0xff]
          %v549 = vld [vmem:[#allocation8] sm:$0xff]
          %v550 = vld [vmem:[#allocation8 + $0x8] sm:$0xff]
          %v551 = vld [vmem:[#allocation8 + $0x10] sm:$0xff]
          %v552 = vld [vmem:[#allocation8 + $0x18] sm:$0xff]
          %v553 = vld [vmem:[#allocation8 + $0x20] sm:$0xff]
          %v554 = vld [vmem:[#allocation8 + $0x28] sm:$0xff]
          %v555 = vld [vmem:[#allocation8 + $0x30] sm:$0xff]
          %v556 = vld [vmem:[#allocation8 + $0x38] sm:$0xff]
          %v557 = vld [vmem:[#allocation8 + $0x40] sm:$0xff]
          %v558 = vld [vmem:[#allocation8 + $0x48] sm:$0xff]
          %v559 = vld [vmem:[#allocation8 + $0x50] sm:$0xff]
          %v560 = vld [vmem:[#allocation8 + $0x58] sm:$0xff]
          %v561 = vld [vmem:[#allocation8 + $0x60] sm:$0xff]
          %v562 = vld [vmem:[#allocation8 + $0x68] sm:$0xff]
          %v563 = vld [vmem:[#allocation8 + $0x70] sm:$0xff]
          %v564 = vld [vmem:[#allocation8 + $0x78] sm:$0xff]
          %v565 = vld [vmem:[%s3] sm:$0x1]
          %v567 = vlaneseq
          %v568 = vshrl.u32 %v567, 7
          %v569 = vsub.s32 0, %v568
          %v570 = vrot.slane %v565, %v569
          %572 = vmatprep.subr.mxu0 0.0
          %573 = vmatpush1.msra.mxu0 %v564
          %574 = vmatprep.subr.mxu0 0.0
          %575 = vmatpush1.msra.mxu0 %v563
          %576 = vmatprep.subr.mxu0 0.0
          %577 = vmatpush1.msra.mxu0 %v562
          %578 = vmatprep.subr.mxu0 0.0
          %579 = vmatpush1.msra.mxu0 %v561
          %580 = vmatprep.subr.mxu0 0.0
          %581 = vmatpush1.msra.mxu0 %v560
          %582 = vmatprep.subr.mxu0 0.0
          %583 = vmatpush1.msra.mxu0 %v559
          %584 = vmatprep.subr.mxu0 0.0
          %585 = vmatpush1.msra.mxu0 %v558
          %586 = vmatprep.subr.mxu0 0.0
          %587 = vmatpush1.msra.mxu0 %v557
          %588 = vmatprep.subr.mxu0 0.0
          %589 = vmatpush1.msra.mxu0 %v556
          %590 = vmatprep.subr.mxu0 0.0
          %591 = vmatpush1.msra.mxu0 %v555
          %592 = vmatprep.subr.mxu0 0.0
          %593 = vmatpush1.msra.mxu0 %v554
          %594 = vmatprep.subr.mxu0 0.0
          %595 = vmatpush1.msra.mxu0 %v553
          %596 = vmatprep.subr.mxu0 0.0
          %597 = vmatpush1.msra.mxu0 %v552
          %598 = vmatprep.subr.mxu0 0.0
          %599 = vmatpush1.msra.mxu0 %v551
          %600 = vmatprep.subr.mxu0 0.0
          %601 = vmatpush1.msra.mxu0 %v550
          %602 = vmatprep.subr.mxu0 0.0
          %603 = vmatpush1.msra.mxu0 %v549
          %604 = vmatprep.subr.mxu0 0.0
          %605 = vmatpush2.msra.mxu0 0.0
          %606 = vmatprep.subr.mxu0 0.0
          %607 = vmatpush2.msra.mxu0 0.0
          %608 = vmatprep.subr.mxu0 0.0
          %609 = vmatpush2.msra.mxu0 0.0
          %610 = vmatprep.subr.mxu0 0.0
          %611 = vmatpush2.msra.mxu0 0.0
          %612 = vmatprep.subr.mxu0 0.0
          %613 = vmatpush2.msra.mxu0 0.0
          %614 = vmatprep.subr.mxu0 0.0
          %615 = vmatpush2.msra.mxu0 0.0
          %616 = vmatprep.subr.mxu0 0.0
          %617 = vmatpush2.msra.mxu0 0.0
          %618 = vmatprep.subr.mxu0 0.0
          %619 = vmatpush2.msra.mxu0 0.0
          %620 = vmatprep.subr.mxu0 0.0
          %621 = vmatpush2.msra.mxu0 0.0
          %622 = vmatprep.subr.mxu0 0.0
          %623 = vmatpush2.msra.mxu0 0.0
          %624 = vmatprep.subr.mxu0 0.0
          %625 = vmatpush2.msra.mxu0 0.0
          %626 = vmatprep.subr.mxu0 0.0
          %627 = vmatpush2.msra.mxu0 0.0
          %628 = vmatprep.subr.mxu0 0.0
          %629 = vmatpush2.msra.mxu0 0.0
          %630 = vmatprep.subr.mxu0 0.0
          %631 = vmatpush2.msra.mxu0 0.0
          %632 = vmatprep.subr.mxu0 0.0
          %633 = vmatpush2.msra.mxu0 0.0
          %634 = vmatprep.subr.mxu0 0.0
          %635 = vmatpush2.msra.mxu0 0.0
          %636 = vmatprep.mubr.f32.mxu0 0.0
          %637 = vmatmul.mubr.f32.gmra.mxu0 %v548
          %v638 = vpop.f32.mrf.mxu0
          %v639 = vadd.f32 %v570, %v638
          %v640 = vpop.f32.mrf.mxu0
          %641 = vdwg.mxu0
          %v642 = vmax.f32 %v639, 0.0
          %v643 = vlaneseq
          %v644 = vshrl.u32 %v643, 7
          %vm645 = vcmp.lt.s32.totalorder %v644, 1
          %v646 = vsel %vm645, %v642, 0.0
          %647 = vst [vmem:[%s286] sm:$0xff] %v646
          %v648 = vld [vmem:[#allocation2 + $0x8] sm:$0xff]
          %s649 = scalar_lea.vmem [#allocation8], 128
          %v650 = vld [vmem:[%s649] sm:$0xff]
          %v651 = vld [vmem:[%s649 + $0x8] sm:$0xff]
          %v652 = vld [vmem:[%s649 + $0x10] sm:$0xff]
          %v653 = vld [vmem:[%s649 + $0x18] sm:$0xff]
          %v654 = vld [vmem:[%s649 + $0x20] sm:$0xff]
          %v655 = vld [vmem:[%s649 + $0x28] sm:$0xff]
          %v656 = vld [vmem:[%s649 + $0x30] sm:$0xff]
          %v657 = vld [vmem:[%s649 + $0x38] sm:$0xff]
          %v658 = vld [vmem:[%s649 + $0x40] sm:$0xff]
          %v659 = vld [vmem:[%s649 + $0x48] sm:$0xff]
          %v660 = vld [vmem:[%s649 + $0x50] sm:$0xff]
          %v661 = vld [vmem:[%s649 + $0x58] sm:$0xff]
          %v662 = vld [vmem:[%s649 + $0x60] sm:$0xff]
          %v663 = vld [vmem:[%s649 + $0x68] sm:$0xff]
          %v664 = vld [vmem:[%s649 + $0x70] sm:$0xff]
          %v665 = vld [vmem:[%s649 + $0x78] sm:$0xff]
          %s666 = scalar_lea.vmem %s3, 1
          %v667 = vld [vmem:[%s666] sm:$0x1]
          %v669 = vlaneseq
          %v670 = vshrl.u32 %v669, 7
          %v671 = vsub.s32 0, %v670
          %v672 = vrot.slane %v667, %v671
          %674 = vmatprep.subr.mxu0 0.0
          %675 = vmatpush1.msra.mxu0 %v665
          %676 = vmatprep.subr.mxu0 0.0
          %677 = vmatpush1.msra.mxu0 %v664
          %678 = vmatprep.subr.mxu0 0.0
          %679 = vmatpush1.msra.mxu0 %v663
          %680 = vmatprep.subr.mxu0 0.0
          %681 = vmatpush1.msra.mxu0 %v662
          %682 = vmatprep.subr.mxu0 0.0
          %683 = vmatpush1.msra.mxu0 %v661
          %684 = vmatprep.subr.mxu0 0.0
          %685 = vmatpush1.msra.mxu0 %v660
          %686 = vmatprep.subr.mxu0 0.0
          %687 = vmatpush1.msra.mxu0 %v659
          %688 = vmatprep.subr.mxu0 0.0
          %689 = vmatpush1.msra.mxu0 %v658
          %690 = vmatprep.subr.mxu0 0.0
          %691 = vmatpush1.msra.mxu0 %v657
          %692 = vmatprep.subr.mxu0 0.0
          %693 = vmatpush1.msra.mxu0 %v656
          %694 = vmatprep.subr.mxu0 0.0
          %695 = vmatpush1.msra.mxu0 %v655
          %696 = vmatprep.subr.mxu0 0.0
          %697 = vmatpush1.msra.mxu0 %v654
          %698 = vmatprep.subr.mxu0 0.0
          %699 = vmatpush1.msra.mxu0 %v653
          %700 = vmatprep.subr.mxu0 0.0
          %701 = vmatpush1.msra.mxu0 %v652
          %702 = vmatprep.subr.mxu0 0.0
          %703 = vmatpush1.msra.mxu0 %v651
          %704 = vmatprep.subr.mxu0 0.0
          %705 = vmatpush1.msra.mxu0 %v650
          %706 = vmatprep.subr.mxu0 0.0
          %707 = vmatpush2.msra.mxu0 0.0
          %708 = vmatprep.subr.mxu0 0.0
          %709 = vmatpush2.msra.mxu0 0.0
          %710 = vmatprep.subr.mxu0 0.0
          %711 = vmatpush2.msra.mxu0 0.0
          %712 = vmatprep.subr.mxu0 0.0
          %713 = vmatpush2.msra.mxu0 0.0
          %714 = vmatprep.subr.mxu0 0.0
          %715 = vmatpush2.msra.mxu0 0.0
          %716 = vmatprep.subr.mxu0 0.0
          %717 = vmatpush2.msra.mxu0 0.0
          %718 = vmatprep.subr.mxu0 0.0
          %719 = vmatpush2.msra.mxu0 0.0
          %720 = vmatprep.subr.mxu0 0.0
          %721 = vmatpush2.msra.mxu0 0.0
          %722 = vmatprep.subr.mxu0 0.0
          %723 = vmatpush2.msra.mxu0 0.0
          %724 = vmatprep.subr.mxu0 0.0
          %725 = vmatpush2.msra.mxu0 0.0
          %726 = vmatprep.subr.mxu0 0.0
          %727 = vmatpush2.msra.mxu0 0.0
          %728 = vmatprep.subr.mxu0 0.0
          %729 = vmatpush2.msra.mxu0 0.0
          %730 = vmatprep.subr.mxu0 0.0
          %731 = vmatpush2.msra.mxu0 0.0
          %732 = vmatprep.subr.mxu0 0.0
          %733 = vmatpush2.msra.mxu0 0.0
          %734 = vmatprep.subr.mxu0 0.0
          %735 = vmatpush2.msra.mxu0 0.0
          %736 = vmatprep.subr.mxu0 0.0
          %737 = vmatpush2.msra.mxu0 0.0
          %738 = vmatprep.mubr.f32.mxu0 0.0
          %739 = vmatmul.mubr.f32.gmra.mxu0 %v648
          %v740 = vpop.f32.mrf.mxu0
          %v741 = vadd.f32 %v672, %v740
          %v742 = vpop.f32.mrf.mxu0
          %743 = vdwg.mxu0
          %v744 = vmax.f32 %v741, 0.0
          %vm745 = vcmp.lt.s32.totalorder %v644, 4
          %v746 = vsel %vm745, %v744, 0.0
          %747 = vst [vmem:[%s286 + $0x28] sm:$0xff] %v746
          %v748 = vld [vmem:[#allocation2 + $0x10] sm:$0xff]
          %v749 = vld [vmem:[#allocation2 + $0x18] sm:$0xff]
          %s750 = scalar_lea.vmem [#allocation8], 256
          %v751 = vld [vmem:[%s750] sm:$0xff]
          %v752 = vld [vmem:[%s750 + $0x8] sm:$0xff]
          %v753 = vld [vmem:[%s750 + $0x10] sm:$0xff]
          %v754 = vld [vmem:[%s750 + $0x18] sm:$0xff]
          %v755 = vld [vmem:[%s750 + $0x20] sm:$0xff]
          %v756 = vld [vmem:[%s750 + $0x28] sm:$0xff]
          %v757 = vld [vmem:[%s750 + $0x30] sm:$0xff]
          %v758 = vld [vmem:[%s750 + $0x38] sm:$0xff]
          %v759 = vld [vmem:[%s750 + $0x40] sm:$0xff]
          %v760 = vld [vmem:[%s750 + $0x48] sm:$0xff]
          %v761 = vld [vmem:[%s750 + $0x50] sm:$0xff]
          %v762 = vld [vmem:[%s750 + $0x58] sm:$0xff]
          %v763 = vld [vmem:[%s750 + $0x60] sm:$0xff]
          %v764 = vld [vmem:[%s750 + $0x68] sm:$0xff]
          %v765 = vld [vmem:[%s750 + $0x70] sm:$0xff]
          %v766 = vld [vmem:[%s750 + $0x78] sm:$0xff]
          %s767 = scalar_lea.vmem %s3, 2
          %v768 = vld [vmem:[%s767] sm:$0x1]
          %v770 = vlaneseq
          %v771 = vshrl.u32 %v770, 7
          %v772 = vsub.s32 0, %v771
          %v773 = vrot.slane %v768, %v772
          %775 = vmatprep.subr.mxu0 0.0
          %776 = vmatpush1.msra.mxu0 %v766
          %777 = vmatprep.subr.mxu0 0.0
          %778 = vmatpush1.msra.mxu0 %v765
          %779 = vmatprep.subr.mxu0 0.0
          %780 = vmatpush1.msra.mxu0 %v764
          %781 = vmatprep.subr.mxu0 0.0
          %782 = vmatpush1.msra.mxu0 %v763
          %783 = vmatprep.subr.mxu0 0.0
          %784 = vmatpush1.msra.mxu0 %v762
          %785 = vmatprep.subr.mxu0 0.0
          %786 = vmatpush1.msra.mxu0 %v761
          %787 = vmatprep.subr.mxu0 0.0
          %788 = vmatpush1.msra.mxu0 %v760
          %789 = vmatprep.subr.mxu0 0.0
          %790 = vmatpush1.msra.mxu0 %v759
          %791 = vmatprep.subr.mxu0 0.0
          %792 = vmatpush1.msra.mxu0 %v758
          %793 = vmatprep.subr.mxu0 0.0
          %794 = vmatpush1.msra.mxu0 %v757
          %795 = vmatprep.subr.mxu0 0.0
          %796 = vmatpush1.msra.mxu0 %v756
          %797 = vmatprep.subr.mxu0 0.0
          %798 = vmatpush1.msra.mxu0 %v755
          %799 = vmatprep.subr.mxu0 0.0
          %800 = vmatpush1.msra.mxu0 %v754
          %801 = vmatprep.subr.mxu0 0.0
          %802 = vmatpush1.msra.mxu0 %v753
          %803 = vmatprep.subr.mxu0 0.0
          %804 = vmatpush1.msra.mxu0 %v752
          %805 = vmatprep.subr.mxu0 0.0
          %806 = vmatpush1.msra.mxu0 %v751
          %807 = vmatprep.subr.mxu0 0.0
          %808 = vmatpush2.msra.mxu0 0.0
          %809 = vmatprep.subr.mxu0 0.0
          %810 = vmatpush2.msra.mxu0 0.0
          %811 = vmatprep.subr.mxu0 0.0
          %812 = vmatpush2.msra.mxu0 0.0
          %813 = vmatprep.subr.mxu0 0.0
          %814 = vmatpush2.msra.mxu0 0.0
          %815 = vmatprep.subr.mxu0 0.0
          %816 = vmatpush2.msra.mxu0 0.0
          %817 = vmatprep.subr.mxu0 0.0
          %818 = vmatpush2.msra.mxu0 0.0
          %819 = vmatprep.subr.mxu0 0.0
          %820 = vmatpush2.msra.mxu0 0.0
          %821 = vmatprep.subr.mxu0 0.0
          %822 = vmatpush2.msra.mxu0 0.0
          %823 = vmatprep.subr.mxu0 0.0
          %824 = vmatpush2.msra.mxu0 0.0
          %825 = vmatprep.subr.mxu0 0.0
          %826 = vmatpush2.msra.mxu0 0.0
          %827 = vmatprep.subr.mxu0 0.0
          %828 = vmatpush2.msra.mxu0 0.0
          %829 = vmatprep.subr.mxu0 0.0
          %830 = vmatpush2.msra.mxu0 0.0
          %831 = vmatprep.subr.mxu0 0.0
          %832 = vmatpush2.msra.mxu0 0.0
          %833 = vmatprep.subr.mxu0 0.0
          %834 = vmatpush2.msra.mxu0 0.0
          %835 = vmatprep.subr.mxu0 0.0
          %836 = vmatpush2.msra.mxu0 0.0
          %837 = vmatprep.subr.mxu0 0.0
          %838 = vmatpush2.msra.mxu0 0.0
          %839 = vmatprep.mubr.f32.mxu0 0.0
          %840 = vmatmul.mubr.f32.gmra.mxu0 %v748
          %v841 = vpop.f32.mrf.mxu0
          %v842 = vadd.f32 %v773, %v841
          %v843 = vpop.f32.mrf.mxu0
          %844 = vmatprep.mubr.f32.mxu0 0.0
          %845 = vmatmul.mubr.f32.gmra.mxu0 %v749
          %v846 = vpop.f32.mrf.mxu0
          %v847 = vadd.f32 %v773, %v846
          %v848 = vpop.f32.mrf.mxu0
          %849 = vdwg.mxu0
          %v850 = vmax.f32 %v842, 0.0
          %v851 = vmax.f32 %v847, 0.0
          %v852 = vadd.s32 %v644, 8
          %vm853 = vcmp.lt.s32.totalorder %v644, 9
          %vm854 = vcmp.lt.s32.totalorder %v852, 9
          %v855 = vsel %vm853, %v850, 0.0
          %v856 = vsel %vm854, %v851, 0.0
          %857 = vst [vmem:[%s286 + $0x50] sm:$0xff] %v855
          %858 = vst [vmem:[%s286 + $0x70] sm:$0xff] %v856
          %v859 = vld [vmem:[#allocation2 + $0x20] sm:$0xff]
          %v860 = vld [vmem:[#allocation2 + $0x28] sm:$0xff]
          %v861 = vld [vmem:[#allocation2 + $0x30] sm:$0xff]
          %v862 = vld [vmem:[#allocation2 + $0x38] sm:$0xff]
          %v863 = vld [vmem:[#allocation2 + $0x40] sm:$0xff]
          %s864 = scalar_lea.vmem [#allocation8], 384
          %v865 = vld [vmem:[%s864] sm:$0xff]
          %v866 = vld [vmem:[%s864 + $0x8] sm:$0xff]
          %v867 = vld [vmem:[%s864 + $0x10] sm:$0xff]
          %v868 = vld [vmem:[%s864 + $0x18] sm:$0xff]
          %v869 = vld [vmem:[%s864 + $0x20] sm:$0xff]
          %v870 = vld [vmem:[%s864 + $0x28] sm:$0xff]
          %v871 = vld [vmem:[%s864 + $0x30] sm:$0xff]
          %v872 = vld [vmem:[%s864 + $0x38] sm:$0xff]
          %v873 = vld [vmem:[%s864 + $0x40] sm:$0xff]
          %v874 = vld [vmem:[%s864 + $0x48] sm:$0xff]
          %v875 = vld [vmem:[%s864 + $0x50] sm:$0xff]
          %v876 = vld [vmem:[%s864 + $0x58] sm:$0xff]
          %v877 = vld [vmem:[%s864 + $0x60] sm:$0xff]
          %v878 = vld [vmem:[%s864 + $0x68] sm:$0xff]
          %v879 = vld [vmem:[%s864 + $0x70] sm:$0xff]
          %v880 = vld [vmem:[%s864 + $0x78] sm:$0xff]
          %s881 = scalar_lea.vmem %s3, 3
          %v882 = vld [vmem:[%s881] sm:$0x1]
          %v884 = vlaneseq
          %v885 = vshrl.u32 %v884, 7
          %v886 = vsub.s32 0, %v885
          %v887 = vrot.slane %v882, %v886
          %889 = vmatprep.subr.mxu0 0.0
          %890 = vmatpush1.msra.mxu0 %v880
          %891 = vmatprep.subr.mxu0 0.0
          %892 = vmatpush1.msra.mxu0 %v879
          %893 = vmatprep.subr.mxu0 0.0
          %894 = vmatpush1.msra.mxu0 %v878
          %895 = vmatprep.subr.mxu0 0.0
          %896 = vmatpush1.msra.mxu0 %v877
          %897 = vmatprep.subr.mxu0 0.0
          %898 = vmatpush1.msra.mxu0 %v876
          %899 = vmatprep.subr.mxu0 0.0
          %900 = vmatpush1.msra.mxu0 %v875
          %901 = vmatprep.subr.mxu0 0.0
          %902 = vmatpush1.msra.mxu0 %v874
          %903 = vmatprep.subr.mxu0 0.0
          %904 = vmatpush1.msra.mxu0 %v873
          %905 = vmatprep.subr.mxu0 0.0
          %906 = vmatpush1.msra.mxu0 %v872
          %907 = vmatprep.subr.mxu0 0.0
          %908 = vmatpush1.msra.mxu0 %v871
          %909 = vmatprep.subr.mxu0 0.0
          %910 = vmatpush1.msra.mxu0 %v870
          %911 = vmatprep.subr.mxu0 0.0
          %912 = vmatpush1.msra.mxu0 %v869
          %913 = vmatprep.subr.mxu0 0.0
          %914 = vmatpush1.msra.mxu0 %v868
          %915 = vmatprep.subr.mxu0 0.0
          %916 = vmatpush1.msra.mxu0 %v867
          %917 = vmatprep.subr.mxu0 0.0
          %918 = vmatpush1.msra.mxu0 %v866
          %919 = vmatprep.subr.mxu0 0.0
          %920 = vmatpush1.msra.mxu0 %v865
          %921 = vmatprep.subr.mxu0 0.0
          %922 = vmatpush2.msra.mxu0 0.0
          %923 = vmatprep.subr.mxu0 0.0
          %924 = vmatpush2.msra.mxu0 0.0
          %925 = vmatprep.subr.mxu0 0.0
          %926 = vmatpush2.msra.mxu0 0.0
          %927 = vmatprep.subr.mxu0 0.0
          %928 = vmatpush2.msra.mxu0 0.0
          %929 = vmatprep.subr.mxu0 0.0
          %930 = vmatpush2.msra.mxu0 0.0
          %931 = vmatprep.subr.mxu0 0.0
          %932 = vmatpush2.msra.mxu0 0.0
          %933 = vmatprep.subr.mxu0 0.0
          %934 = vmatpush2.msra.mxu0 0.0
          %935 = vmatprep.subr.mxu0 0.0
          %936 = vmatpush2.msra.mxu0 0.0
          %937 = vmatprep.subr.mxu0 0.0
          %938 = vmatpush2.msra.mxu0 0.0
          %939 = vmatprep.subr.mxu0 0.0
          %940 = vmatpush2.msra.mxu0 0.0
          %941 = vmatprep.subr.mxu0 0.0
          %942 = vmatpush2.msra.mxu0 0.0
          %943 = vmatprep.subr.mxu0 0.0
          %944 = vmatpush2.msra.mxu0 0.0
          %945 = vmatprep.subr.mxu0 0.0
          %946 = vmatpush2.msra.mxu0 0.0
          %947 = vmatprep.subr.mxu0 0.0
          %948 = vmatpush2.msra.mxu0 0.0
          %949 = vmatprep.subr.mxu0 0.0
          %950 = vmatpush2.msra.mxu0 0.0
          %951 = vmatprep.subr.mxu0 0.0
          %952 = vmatpush2.msra.mxu0 0.0
          %953 = vmatprep.mubr.f32.mxu0 0.0
          %954 = vmatmul.mubr.f32.gmra.mxu0 %v859
          %v955 = vpop.f32.mrf.mxu0
          %v956 = vadd.f32 %v887, %v955
          %v957 = vpop.f32.mrf.mxu0
          %958 = vmatprep.mubr.f32.mxu0 0.0
          %959 = vmatmul.mubr.f32.gmra.mxu0 %v860
          %v960 = vpop.f32.mrf.mxu0
          %v961 = vadd.f32 %v887, %v960
          %v962 = vpop.f32.mrf.mxu0
          %963 = vmatprep.mubr.f32.mxu0 0.0
          %964 = vmatmul.mubr.f32.gmra.mxu0 %v861
          %v965 = vpop.f32.mrf.mxu0
          %v966 = vadd.f32 %v887, %v965
          %v967 = vpop.f32.mrf.mxu0
          %968 = vmatprep.mubr.f32.mxu0 0.0
          %969 = vmatmul.mubr.f32.gmra.mxu0 %v862
          %v970 = vpop.f32.mrf.mxu0
          %v971 = vadd.f32 %v887, %v970
          %v972 = vpop.f32.mrf.mxu0
          %973 = vmatprep.mubr.f32.mxu0 0.0
          %974 = vmatmul.mubr.f32.gmra.mxu0 %v863
          %v975 = vpop.f32.mrf.mxu0
          %v976 = vadd.f32 %v887, %v975
          %v977 = vpop.f32.mrf.mxu0
          %978 = vdwg.mxu0
          %v979 = vmax.f32 %v956, 0.0
          %v980 = vmax.f32 %v961, 0.0
          %v981 = vmax.f32 %v966, 0.0
          %v982 = vmax.f32 %v971, 0.0
          %v983 = vmax.f32 %v976, 0.0
          %v984 = vadd.s32 %v644, 16
          %v985 = vadd.s32 %v644, 24
          %v986 = vadd.s32 %v644, 32
          %vm987 = vcmp.lt.s32.totalorder %v644, 36
          %vm988 = vcmp.lt.s32.totalorder %v852, 36
          %vm989 = vcmp.lt.s32.totalorder %v984, 36
          %vm990 = vcmp.lt.s32.totalorder %v985, 36
          %vm991 = vcmp.lt.s32.totalorder %v986, 36
          %v992 = vsel %vm987, %v979, 0.0
          %v993 = vsel %vm988, %v980, 0.0
          %v994 = vsel %vm989, %v981, 0.0
          %v995 = vsel %vm990, %v982, 0.0
          %v996 = vsel %vm991, %v983, 0.0
          %997 = vst [vmem:[%s286 + $0x98] sm:$0xff] %v992
          %998 = vst [vmem:[%s286 + $0xb8] sm:$0xff] %v993
          %999 = vst [vmem:[%s286 + $0xd8] sm:$0xff] %v994
          %1000 = vst [vmem:[%s286 + $0xf8] sm:$0xff] %v995
          %1001 = vst [vmem:[%s286 + $0x118] sm:$0xff] %v996
        $region56: #{tpu_custom_call.1} parent=35 // pred_fallthru
          _
        %s1002 = sand.u32 %s140, 1
        %s1003 = scalar_lea.sflag [#allocation5], %s1002
        %s1004 = sand.u32 %s140, 1
        %s1005 = smul.addr %s1004, 288
        %s1006 = scalar_lea.vmem [#allocation9], %s1005
        // Predicated region
        $region57: #{tpu_custom_call.1} parent=35 // pred_check
          %p1007 = pneg %p150
        $region58: #{tpu_custom_call.1} parent=35 // pred_check_branch
          %1009 = sbr.rel (%p1007) target = $region60
        $region59: #{tpu_custom_call.1} parent=35 // pred_region
          %s1011 = ssub.s32 4608, 4608
          %1012 = vsyncadd %s1003, %s1011
          %s1013 = smul.addr %s28, 36
          %s1014 = smul.addr %s1013, 128
          %s1015 = scalar_lea.hbm %s4, %s1014
          %s1016 = sshll.u32 %s1006, 4
          %s1017 = int_to_ptr.vmem [resolvable:$true] %s1016
          %1022 = dma.vmem_to_hbm [thread:$0]  %s1017, 4608, %s1015, %s1003, 512, 512, 32
        $region60: #{tpu_custom_call.1} parent=35 // pred_fallthru
          _
      $region36: #{tpu_custom_call.1} parent=5 // pred_fallthru
        _
      %p1023 = scmp.le.s32.totalorder 2, %s19
      // Predicated region
      $region61: #{tpu_custom_call.1} parent=5 // pred_check
        %p1024 = pneg %p1023
      $region62: #{tpu_custom_call.1} parent=5 // pred_check_branch
        %1026 = sbr.rel (%p1024) target = $region64
      $region63: #{tpu_custom_call.1} parent=5 // pred_region
        %s1027 = ssub.s32 %s19, 2
        // Predicated region
        $region65: #{tpu_custom_call.1} parent=63 // pred_check
          %p1028 = pneg %p156
        $region66: #{tpu_custom_call.1} parent=63 // pred_check_branch
          %1030 = sbr.rel (%p1028) target = $region68
        $region67: #{tpu_custom_call.1} parent=63 // pred_region
          %s1031 = sand.u32 %s141, 1
          %s1032 = scalar_lea.sflag [#allocation5], %s1031
          %s1033 = sand.u32 %s141, 1
          %s1034 = smul.addr %s1033, 288
          %s1035 = scalar_lea.vmem [#allocation9], %s1034
          %1036 = dma.done %s1032, 4608
        $region68: #{tpu_custom_call.1} parent=63 // pred_fallthru
          _
      $region64: #{tpu_custom_call.1} parent=5 // pred_fallthru
        _
    $region6: #{tpu_custom_call.1} parent=1 // loop_footer
      %s23 = sadd.s32 1, %s19
    $region7: #{tpu_custom_call.1} parent=1 // loop_footer_branch
      %18 = sbr.rel target = $region3
    $region8: #{tpu_custom_call.1} parent=1 // loop_exit
      _
    %1037 = vsyncpa [#allocation4], 1
    %s1038 = scalar_lea.sflag [#allocation4], 1
    %1039 = vsyncpa %s1038, 1
    %1040 = vsyncpa [#allocation7], 1
    %s1041 = scalar_lea.sflag [#allocation7], 1
    %1042 = vsyncpa %s1041, 1
    %1043 = vsyncpa [#allocation5], 1
    %s1044 = scalar_lea.sflag [#allocation5], 1
    %1045 = vsyncpa %s1044, 1

// kernel: tpu_custom_call.1
$region0: #{tpu_custom_call.1}
  #allocation0 [shape = 'u32[]', space=smem, size = 0x4, offset = 0x4, fixed_abs, tag = 'smem constant byte address 0x4 - core index']
  #allocation1 [shape = 'u32[144,128]{1,0:T(1,128)}', space=vmem, size = 0x12000, scoped, tag = 'internal scratch']
  #allocation2 [shape = 'f32[72,128]{1,0:T(8,128)}', space=vmem, size = 0x9000, scoped, tag = 'scratch operand']
  %s0 = inlined_call_operand.hbm [shape: f32[2,24,24,128], index: 0, kind: input, shape index: {}]
  %s1 = inlined_call_operand.hbm [shape: f32[3,72,192], index: 1, kind: input, shape index: {}]
  %s2 = inlined_call_operand.hbm [shape: f32[4,128,128], index: 2, kind: input, shape index: {}]
  %s3 = inlined_call_operand.vmem [shape: f32[4,1,128], index: 3, kind: input, shape index: {}]
  %s4 = inlined_call_operand.hbm [shape: f32[2,72,512], index: 4, kind: output, shape index: {}]
  %s5 = sld [smem:[#allocation0]]
  $region69: #{tpu_custom_call.1} parent=0
    _
  %s7 = ssub.s32 1, %s5
  %s8 = scalar_select 0, %s7, %s5
  $region1: #{tpu_custom_call.1} parent=0
    #allocation3 [shape = 'u8[196608]{0}', space=vmem, size = 0x30000, scoped, tag = 'input window, operand 0']
    #allocation4 [shape = 's32[2]{0}', space=sflag, size = 0x8, scoped, tag = 'scoped memory for tpu_custom_call.1']
    #allocation5 [shape = 's32[2]{0}', space=sflag, size = 0x8, scoped, tag = 'scoped memory for tpu_custom_call.1']
    #allocation6 [shape = 'u8[147456]{0}', space=vmem, size = 0x24000, scoped, tag = 'input window, operand 1']
    #allocation7 [shape = 's32[2]{0}', space=sflag, size = 0x8, scoped, tag = 'scoped memory for tpu_custom_call.1']
    #allocation8 [shape = 'u8[262144]{0}', space=vmem, size = 0x40000, scoped, tag = 'input window, operand 2, single buffered']
    #allocation9 [shape = 'u8[294912]{0}', space=vmem, size = 0x48000, scoped, tag = 'output window, operand 0']
    %9 = vsyncpa [#allocation4], 0
    %s10 = scalar_lea.sflag [#allocation4], 1
    %11 = vsyncpa %s10, 0
    %12 = vsyncpa [#allocation7], 0
    %s13 = scalar_lea.sflag [#allocation7], 1
    %14 = vsyncpa %s13, 0
    %15 = vsyncpa [#allocation5], 0
    %s16 = scalar_lea.sflag [#allocation5], 1
    %17 = vsyncpa %s16, 0
    loop: start=0, step=1, limit=8
    $region2: #{tpu_custom_call.1} parent=1 // loop_pre_header
      _
    $region3: #{tpu_custom_call.1} parent=1 // loop_header
      %s19 = sphi 0, %s23
      %p20 = scmp.ge.s32.totalorder %s19, 8
      %s26 = sphi 0, %s38
      %s27 = sphi 0, %s34
      %s28 = sphi 0, %s26
      %s29 = sphi 0, %s27
      %s30 = sphi 0, %s28
      %s31 = sphi 0, %s29
      %s43 = sphi 0, %s45
      %s46 = sphi 0, %s43
      %s47 = sphi 0, %s46
      %s63 = sphi 0, %s47
      %s69 = sphi 0, %s71
      %s72 = sphi 0, %s69
      %s73 = sphi 0, %s72
      %s89 = sphi 0, %s73
      %s93 = sphi 0, %s93
      %s95 = sphi 0, %s93
      %s96 = sphi 0, %s95
      %s110 = sphi 0, %s96
      %s114 = sphi 0, %s114
      %s116 = sphi 0, %s114
      %s117 = sphi 0, %s116
      %s131 = sphi 0, %s117
      %s137 = sphi 0, %s139
      %s140 = sphi 0, %s137
      %s141 = sphi 0, %s140
      %s157 = sphi 0, %s141
    $region4: #{tpu_custom_call.1} parent=1 // loop_header_branch
      %22 = sbr.rel (%p20) target = $region8
    $region5: #{tpu_custom_call.1} parent=1 // loop_body
      %s24 = ssub.s32 %s19, 1
      %s25 = ssub.s32 %s19, 2
      %s32 = sadd.s32 1, %s27
      %p33 = scmp.ge.s32.totalorder %s32, 3
      %s34 = scalar_select %p33, 0, %s32
      %s35 = sadd.s32 1, %s26
      %s36 = scalar_select %p33, %s35, %s26
      %p37 = scmp.ge.s32.totalorder %s36, 2
      %s38 = scalar_select %p37, 0, %s36
      %s39 = ssub.s32 %s26, %s38
      %s40 = ssub.s32 %s27, %s34
      %s41 = sor.u32 %s39, %s40
      %p42 = scmp.eq.s32.totalorder %s41, 0
      %s44 = sadd.s32 %s43, 1
      %s45 = scalar_select %p42, %s43, %s44
      %p48 = pneg %p42
      %p49 = scmp.eq.s32.totalorder %s19, 5
      %p50 = por %p48, %p49
      %p51 = scmp.ne.s32.totalorder %s43, %s46
      %p52 = scmp.eq.s32.totalorder %s19, 0
      %p53 = por %p51, %p52
      %p54 = scmp.ne.s32.totalorder %s43, %s46
      %p55 = scmp.eq.s32.totalorder %s24, 5
      %p56 = por %p54, %p55
      %p57 = scmp.ne.s32.totalorder %s46, %s47
      %p58 = scmp.eq.s32.totalorder %s24, 0
      %p59 = por %p57, %p58
      %p60 = scmp.ne.s32.totalorder %s46, %s47
      %p61 = scmp.eq.s32.totalorder %s25, 5
      %p62 = por %p60, %p61
      %p64 = scmp.ne.s32.totalorder %s47, %s63
      %p65 = scmp.eq.s32.totalorder %s25, 0
      %p66 = por %p64, %p65
      %s67 = ssub.s32 %s27, %s34
      %p68 = scmp.eq.s32.totalorder %s67, 0
      %s70 = sadd.s32 %s69, 1
      %s71 = scalar_select %p68, %s69, %s70
      %p74 = pneg %p68
      %p75 = scmp.eq.s32.totalorder %s19, 5
      %p76 = por %p74, %p75
      %p77 = scmp.ne.s32.totalorder %s69, %s72
      %p78 = scmp.eq.s32.totalorder %s19, 0
      %p79 = por %p77, %p78
      %p80 = scmp.ne.s32.totalorder %s69, %s72
      %p81 = scmp.eq.s32.totalorder %s24, 5
      %p82 = por %p80, %p81
      %p83 = scmp.ne.s32.totalorder %s72, %s73
      %p84 = scmp.eq.s32.totalorder %s24, 0
      %p85 = por %p83, %p84
      %p86 = scmp.ne.s32.totalorder %s72, %s73
      %p87 = scmp.eq.s32.totalorder %s25, 5
      %p88 = por %p86, %p87
      %p90 = scmp.ne.s32.totalorder %s73, %s89
      %p91 = scmp.eq.s32.totalorder %s25, 0
      %p92 = por %p90, %p91
      %s94 = sadd.s32 %s93, 1
      %p97 = scmp.eq.s32.totalorder %s19, 5
      %p98 = scmp.ne.s32.totalorder %s93, %s95
      %p99 = scmp.eq.s32.totalorder %s19, 0
      %p100 = por %p98, %p99
      %p101 = scmp.ne.s32.totalorder %s93, %s95
      %p102 = scmp.eq.s32.totalorder %s24, 5
      %p103 = por %p101, %p102
      %p104 = scmp.ne.s32.totalorder %s95, %s96
      %p105 = scmp.eq.s32.totalorder %s24, 0
      %p106 = por %p104, %p105
      %p107 = scmp.ne.s32.totalorder %s95, %s96
      %p108 = scmp.eq.s32.totalorder %s25, 5
      %p109 = por %p107, %p108
      %p111 = scmp.ne.s32.totalorder %s96, %s110
      %p112 = scmp.eq.s32.totalorder %s25, 0
      %p113 = por %p111, %p112
      %s115 = sadd.s32 %s114, 1
      %p118 = scmp.eq.s32.totalorder %s19, 5
      %p119 = scmp.ne.s32.totalorder %s114, %s116
      %p120 = scmp.eq.s32.totalorder %s19, 0
      %p121 = por %p119, %p120
      %p122 = scmp.ne.s32.totalorder %s114, %s116
      %p123 = scmp.eq.s32.totalorder %s24, 5
      %p124 = por %p122, %p123
      %p125 = scmp.ne.s32.totalorder %s116, %s117
      %p126 = scmp.eq.s32.totalorder %s24, 0
      %p127 = por %p125, %p126
      %p128 = scmp.ne.s32.totalorder %s116, %s117
      %p129 = scmp.eq.s32.totalorder %s25, 5
      %p130 = por %p128, %p129
      %p132 = scmp.ne.s32.totalorder %s117, %s131
      %p133 = scmp.eq.s32.totalorder %s25, 0
      %p134 = por %p132, %p133
      %s135 = ssub.s32 %s26, %s38
      %p136 = scmp.eq.s32.totalorder %s135, 0
      %s138 = sadd.s32 %s137, 1
      %s139 = scalar_select %p136, %s137, %s138
      %p142 = pneg %p136
      %p143 = scmp.eq.s32.totalorder %s19, 5
      %p144 = por %p142, %p143
      %p145 = scmp.ne.s32.totalorder %s137, %s140
      %p146 = scmp.eq.s32.totalorder %s19, 0
      %p147 = por %p145, %p146
      %p148 = scmp.ne.s32.totalorder %s137, %s140
      %p149 = scmp.eq.s32.totalorder %s24, 5
      %p150 = por %p148, %p149
      %p151 = scmp.ne.s32.totalorder %s140, %s141
      %p152 = scmp.eq.s32.totalorder %s24, 0
      %p153 = por %p151, %p152
      %p154 = scmp.ne.s32.totalorder %s140, %s141
      %p155 = scmp.eq.s32.totalorder %s25, 5
      %p156 = por %p154, %p155
      %p158 = scmp.ne.s32.totalorder %s141, %s157
      %p159 = scmp.eq.s32.totalorder %s25, 0
      %p160 = por %p158, %p159
      %p161 = scmp.le.s32.totalorder 1, %s19
      %p162 = scmp.lt.s32.totalorder %s19, 7
      %p163 = pnand %p161, %p162
      %p164 = pneg %p163
      // Predicated region
      $region9: #{tpu_custom_call.1} parent=5 // pred_check
        _
      $region10: #{tpu_custom_call.1} parent=5 // pred_check_branch
        %166 = sbr.rel (%p163) target = $region12
      $region11: #{tpu_custom_call.1} parent=5 // pred_region
        %s167 = ssub.s32 %s19, 1
        // Predicated region
        $region13: #{tpu_custom_call.1} parent=11 // pred_check
          %p168 = pneg %p106
        $region14: #{tpu_custom_call.1} parent=11 // pred_check_branch
          %170 = sbr.rel (%p168) target = $region16
        $region15: #{tpu_custom_call.1} parent=11 // pred_region
          %s172 = ssub.s32 8192, 8192
          %173 = vsyncadd [#allocation7], %s172
          %s174 = sshll.u32 [#allocation8], 4
          %s175 = int_to_ptr.vmem [resolvable:$true] %s174
          %180 = dma.hbm_to_vmem [thread:$0]  %s2, 8192, %s175, [#allocation7], 128, 128, 8
        $region16: #{tpu_custom_call.1} parent=11 // pred_fallthru
          _
        // Predicated region
        $region17: #{tpu_custom_call.1} parent=11 // pred_check
          %p181 = pneg %p127
        $region18: #{tpu_custom_call.1} parent=11 // pred_check_branch
          %183 = sbr.rel (%p181) target = $region20
        $region19: #{tpu_custom_call.1} parent=11 // pred_region
          _
        $region20: #{tpu_custom_call.1} parent=11 // pred_fallthru
          _
      $region12: #{tpu_custom_call.1} parent=5 // pred_fallthru
        _
      %p184 = scmp.lt.s32.totalorder %s19, 6
      // Predicated region
      $region21: #{tpu_custom_call.1} parent=5 // pred_check
        %p185 = pneg %p184
      $region22: #{tpu_custom_call.1} parent=5 // pred_check_branch
        %187 = sbr.rel (%p185) target = $region24
      $region23: #{tpu_custom_call.1} parent=5 // pred_region
        // Predicated region
        $region25: #{tpu_custom_call.1} parent=23 // pred_check
          %p188 = pneg %p53
        $region26: #{tpu_custom_call.1} parent=23 // pred_check_branch
          %190 = sbr.rel (%p188) target = $region28
        $region27: #{tpu_custom_call.1} parent=23 // pred_region
          %s191 = sand.u32 %s43, 1
          %s192 = scalar_lea.sflag [#allocation4], %s191
          %s193 = sand.u32 %s43, 1
          %s194 = smul.addr %s193, 192
          %s195 = scalar_lea.vmem [#allocation3], %s194
          %s196 = smul.u32 8, %s27
          %s198 = ssub.s32 3072, 3072
          %199 = vsyncadd %s192, %s198
          %s200 = smul.addr %s196, 3
          %s201 = smul.addr %s26, 72
          %s202 = sadd.s32 %s200, %s201
          %s203 = smul.addr %s202, 128
          %s204 = scalar_lea.hbm %s0, %s203
          %s205 = sshll.u32 %s195, 4
          %s206 = int_to_ptr.vmem [resolvable:$true] %s205
          %211 = dma.hbm_to_vmem [thread:$0]  %s204, 3072, %s206, %s192, 128, 128, 8
        $region28: #{tpu_custom_call.1} parent=23 // pred_fallthru
          _
        // Predicated region
        $region29: #{tpu_custom_call.1} parent=23 // pred_check
          %p212 = pneg %p79
        $region30: #{tpu_custom_call.1} parent=23 // pred_check_branch
          %214 = sbr.rel (%p212) target = $region32
        $region31: #{tpu_custom_call.1} parent=23 // pred_region
          %s215 = sand.u32 %s19, 1
          %s216 = scalar_lea.sflag [#allocation7], %s215
          %s217 = sand.u32 %s69, 1
          %s218 = smul.addr %s217, 144
          %s219 = scalar_lea.vmem [#allocation6], %s218
          %s221 = ssub.s32 2304, 2304
          %222 = vsyncadd %s216, %s221
          %s223 = smul.addr %s27, 18
          %s224 = smul.addr %s223, 128
          %s225 = scalar_lea.hbm %s1, %s224
          %s226 = sshll.u32 %s219, 4
          %s227 = int_to_ptr.vmem [resolvable:$true] %s226
          %232 = dma.hbm_to_vmem [thread:$0]  %s225, 2304, %s227, %s216, 256, 256, 16
        $region32: #{tpu_custom_call.1} parent=23 // pred_fallthru
          _
      $region24: #{tpu_custom_call.1} parent=5 // pred_fallthru
        _
      %p233 = scmp.le.s32.totalorder 1, %s19
      %p234 = scmp.lt.s32.totalorder %s19, 7
      %p235 = pnand %p233, %p234
      %p236 = pneg %p235
      // Predicated region
      $region33: #{tpu_custom_call.1} parent=5 // pred_check
        _
      $region34: #{tpu_custom_call.1} parent=5 // pred_check_branch
        %238 = sbr.rel (%p235) target = $region36
      $region35: #{tpu_custom_call.1} parent=5 // pred_region
        %s239 = ssub.s32 %s19, 1
        %s240 = sand.u32 %s46, 1
        %s241 = scalar_lea.sflag [#allocation4], %s240
        %s242 = sand.u32 %s46, 1
        %s243 = smul.addr %s242, 192
        %s244 = scalar_lea.vmem [#allocation3], %s243
        // Predicated region
        $region37: #{tpu_custom_call.1} parent=35 // pred_check
          %p245 = pneg %p59
        $region38: #{tpu_custom_call.1} parent=35 // pred_check_branch
          %247 = sbr.rel (%p245) target = $region40
        $region39: #{tpu_custom_call.1} parent=35 // pred_region
          %248 = dma.done %s241, 3072
        $region40: #{tpu_custom_call.1} parent=35 // pred_fallthru
          _
        %s249 = sand.u32 %s24, 1
        %s250 = scalar_lea.sflag [#allocation7], %s249
        %s251 = sand.u32 %s72, 1
        %s252 = smul.addr %s251, 144
        %s253 = scalar_lea.vmem [#allocation6], %s252
        // Predicated region
        $region41: #{tpu_custom_call.1} parent=35 // pred_check
          %p254 = pneg %p85
        $region42: #{tpu_custom_call.1} parent=35 // pred_check_branch
          %256 = sbr.rel (%p254) target = $region44
        $region43: #{tpu_custom_call.1} parent=35 // pred_region
          %257 = dma.done %s250, 2304
        $region44: #{tpu_custom_call.1} parent=35 // pred_fallthru
          _
        // Predicated region
        $region45: #{tpu_custom_call.1} parent=35 // pred_check
          %p258 = pneg %p106
        $region46: #{tpu_custom_call.1} parent=35 // pred_check_branch
          %260 = sbr.rel (%p258) target = $region48
        $region47: #{tpu_custom_call.1} parent=35 // pred_region
          %261 = dma.done [#allocation7], 8192
        $region48: #{tpu_custom_call.1} parent=35 // pred_fallthru
          _
        %s262 = sand.u32 %s46, 1
        %s263 = scalar_lea.sflag [#allocation4], %s262
        %s264 = sand.u32 %s46, 1
        %s265 = smul.addr %s264, 192
        %s266 = scalar_lea.vmem [#allocation3], %s265
        %p267 = pneg %p59
        %p268 = pneg %p56
        %s269 = sand.u32 %s24, 1
        %s270 = scalar_lea.sflag [#allocation7], %s269
        %s271 = sand.u32 %s72, 1
        %s272 = smul.addr %s271, 144
        %s273 = scalar_lea.vmem [#allocation6], %s272
        %p274 = pneg %p85
        %p275 = pneg %p82
        %p276 = pneg %p106
        %p277 = pneg %p103
        %p278 = pneg %p127
        %p279 = pneg %p124
        %p280 = pneg %p153
        %p281 = pneg %p150
        %s282 = sand.u32 %s140, 1
        %s283 = scalar_lea.sflag [#allocation5], %s282
        %s284 = sand.u32 %s140, 1
        %s285 = smul.addr %s284, 288
        %s286 = scalar_lea.vmem [#allocation9], %s285
        %s287 = smul.u32 8, %s29
        %p288 = scmp.eq.s32.totalorder %s29, 0
        // Predicated region
        $region49: #{tpu_custom_call.1} parent=35 // pred_check
          %p289 = pneg %p288
        $region50: #{tpu_custom_call.1} parent=35 // pred_check_branch
          %291 = sbr.rel (%p289) target = $region52
        $region51: #{tpu_custom_call.1} parent=35 // pred_region
          %292 = vst [vmem:[#allocation2] sm:$0xff] 0.0
          %293 = vst [vmem:[#allocation2 + $0x8] sm:$0xff] 0.0
          %294 = vst [vmem:[#allocation2 + $0x10] sm:$0xff] 0.0
          %295 = vst [vmem:[#allocation2 + $0x18] sm:$0xff] 0.0
          %296 = vst [vmem:[#allocation2 + $0x20] sm:$0xff] 0.0
          %297 = vst [vmem:[#allocation2 + $0x28] sm:$0xff] 0.0
          %298 = vst [vmem:[#allocation2 + $0x30] sm:$0xff] 0.0
          %299 = vst [vmem:[#allocation2 + $0x38] sm:$0xff] 0.0
          %300 = vst [vmem:[#allocation2 + $0x40] sm:$0xff] 0.0
        $region52: #{tpu_custom_call.1} parent=35 // pred_fallthru
          _
        %v301 = vld [vmem:[%s244] sm:$0xff]
        %v302 = vld [vmem:[%s244 + $0x8] sm:$0xff]
        %v303 = vld [vmem:[%s244 + $0x10] sm:$0xff]
        %v304 = vld [vmem:[%s244 + $0x18] sm:$0xff]
        %v305 = vld [vmem:[%s244 + $0x20] sm:$0xff]
        %v306 = vld [vmem:[%s244 + $0x28] sm:$0xff]
        %v307 = vld [vmem:[%s244 + $0x30] sm:$0xff]
        %v308 = vld [vmem:[%s244 + $0x38] sm:$0xff]
        %v309 = vld [vmem:[%s244 + $0x40] sm:$0xff]
        %v310 = vld [vmem:[%s244 + $0x48] sm:$0xff]
        %v311 = vld [vmem:[%s244 + $0x50] sm:$0xff]
        %v312 = vld [vmem:[%s244 + $0x58] sm:$0xff]
        %v313 = vld [vmem:[%s244 + $0x60] sm:$0xff]
        %v314 = vld [vmem:[%s244 + $0x68] sm:$0xff]
        %v315 = vld [vmem:[%s244 + $0x70] sm:$0xff]
        %v316 = vld [vmem:[%s244 + $0x78] sm:$0xff]
        %v317 = vld [vmem:[%s244 + $0x80] sm:$0xff]
        %v318 = vld [vmem:[%s244 + $0x88] sm:$0xff]
        %v319 = vld [vmem:[%s244 + $0x90] sm:$0xff]
        %v320 = vld [vmem:[%s244 + $0x98] sm:$0xff]
        %v321 = vld [vmem:[%s244 + $0xa0] sm:$0xff]
        %v322 = vld [vmem:[%s244 + $0xa8] sm:$0xff]
        %v323 = vld [vmem:[%s244 + $0xb0] sm:$0xff]
        %v324 = vld [vmem:[%s244 + $0xb8] sm:$0xff]
        %v325 = vld [vmem:[#allocation2] sm:$0xff]
        %v326 = vld [vmem:[#allocation2 + $0x8] sm:$0xff]
        %v327 = vld [vmem:[#allocation2 + $0x10] sm:$0xff]
        %v328 = vld [vmem:[#allocation2 + $0x18] sm:$0xff]
        %v329 = vld [vmem:[#allocation2 + $0x20] sm:$0xff]
        %v330 = vld [vmem:[#allocation2 + $0x28] sm:$0xff]
        %v331 = vld [vmem:[#allocation2 + $0x30] sm:$0xff]
        %v332 = vld [vmem:[#allocation2 + $0x38] sm:$0xff]
        %v333 = vld [vmem:[#allocation2 + $0x40] sm:$0xff]
        %v334 = vld [vmem:[%s253] sm:$0xff]
        %v335 = vld [vmem:[%s253 + $0x8] sm:$0xff]
        %v336 = vld [vmem:[%s253 + $0x10] sm:$0xff]
        %v337 = vld [vmem:[%s253 + $0x18] sm:$0xff]
        %v338 = vld [vmem:[%s253 + $0x20] sm:$0xff]
        %v339 = vld [vmem:[%s253 + $0x28] sm:$0xff]
        %v340 = vld [vmem:[%s253 + $0x30] sm:$0xff]
        %v341 = vld [vmem:[%s253 + $0x38] sm:$0xff]
        %v342 = vld [vmem:[%s253 + $0x40] sm:$0xff]
        %v343 = vld [vmem:[%s253 + $0x48] sm:$0xff]
        %v344 = vld [vmem:[%s253 + $0x50] sm:$0xff]
        %v345 = vld [vmem:[%s253 + $0x58] sm:$0xff]
        %v346 = vld [vmem:[%s253 + $0x60] sm:$0xff]
        %v347 = vld [vmem:[%s253 + $0x68] sm:$0xff]
        %v348 = vld [vmem:[%s253 + $0x70] sm:$0xff]
        %v349 = vld [vmem:[%s253 + $0x78] sm:$0xff]
        %v350 = vld [vmem:[%s253 + $0x80] sm:$0xff]
        %v351 = vld [vmem:[%s253 + $0x88] sm:$0xff]
        %vm352 = vcmask 523264
        %v354 = vsel %vm352, %v335, 0
        %v357 = vsel %vm352, %v337, 0
        %v360 = vsel %vm352, %v339, 0
        %v363 = vsel %vm352, %v341, 0
        %v366 = vsel %vm352, %v343, 0
        %v369 = vsel %vm352, %v345, 0
        %v372 = vsel %vm352, %v347, 0
        %v375 = vsel %vm352, %v349, 0
        %v378 = vsel %vm352, %v351, 0
        %380 = vmatprep.subr.mxu0 0.0
        %381 = vmatpush1.msra.mxu0 %v316
        %382 = vmatprep.subr.mxu0 0.0
        %383 = vmatpush1.msra.mxu0 %v315
        %384 = vmatprep.subr.mxu0 0.0
        %385 = vmatpush1.msra.mxu0 %v314
        %386 = vmatprep.subr.mxu0 0.0
        %387 = vmatpush1.msra.mxu0 %v313
        %388 = vmatprep.subr.mxu0 0.0
        %389 = vmatpush1.msra.mxu0 %v312
        %390 = vmatprep.subr.mxu0 0.0
        %391 = vmatpush1.msra.mxu0 %v311
        %392 = vmatprep.subr.mxu0 0.0
        %393 = vmatpush1.msra.mxu0 %v310
        %394 = vmatprep.subr.mxu0 0.0
        %395 = vmatpush1.msra.mxu0 %v309
        %396 = vmatprep.subr.mxu0 0.0
        %397 = vmatpush1.msra.mxu0 %v308
        %398 = vmatprep.subr.mxu0 0.0
        %399 = vmatpush1.msra.mxu0 %v307
        %400 = vmatprep.subr.mxu0 0.0
        %401 = vmatpush1.msra.mxu0 %v306
        %402 = vmatprep.subr.mxu0 0.0
        %403 = vmatpush1.msra.mxu0 %v305
        %404 = vmatprep.subr.mxu0 0.0
        %405 = vmatpush1.msra.mxu0 %v304
        %406 = vmatprep.subr.mxu0 0.0
        %407 = vmatpush1.msra.mxu0 %v303
        %408 = vmatprep.subr.mxu0 0.0
        %409 = vmatpush1.msra.mxu0 %v302
        %410 = vmatprep.subr.mxu0 0.0
        %411 = vmatpush1.msra.mxu0 %v301
        %412 = vmatprep.subr.mxu0 0.0
        %413 = vmatpush2.msra.mxu0 0.0
        %414 = vmatprep.subr.mxu0 0.0
        %415 = vmatpush2.msra.mxu0 0.0
        %416 = vmatprep.subr.mxu0 0.0
        %417 = vmatpush2.msra.mxu0 0.0
        %418 = vmatprep.subr.mxu0 0.0
        %419 = vmatpush2.msra.mxu0 0.0
        %420 = vmatprep.subr.mxu0 0.0
        %421 = vmatpush2.msra.mxu0 0.0
        %422 = vmatprep.subr.mxu0 0.0
        %423 = vmatpush2.msra.mxu0 0.0
        %424 = vmatprep.subr.mxu0 0.0
        %425 = vmatpush2.msra.mxu0 0.0
        %426 = vmatprep.subr.mxu0 0.0
        %427 = vmatpush2.msra.mxu0 0.0
        %428 = vmatprep.subr.mxu0 0.0
        %429 = vmatpush2.msra.mxu0 %v324
        %430 = vmatprep.subr.mxu0 0.0
        %431 = vmatpush2.msra.mxu0 %v323
        %432 = vmatprep.subr.mxu0 0.0
        %433 = vmatpush2.msra.mxu0 %v322
        %434 = vmatprep.subr.mxu0 0.0
        %435 = vmatpush2.msra.mxu0 %v321
        %436 = vmatprep.subr.mxu0 0.0
        %437 = vmatpush2.msra.mxu0 %v320
        %438 = vmatprep.subr.mxu0 0.0
        %439 = vmatpush2.msra.mxu0 %v319
        %440 = vmatprep.subr.mxu0 0.0
        %441 = vmatpush2.msra.mxu0 %v318
        %442 = vmatprep.subr.mxu0 0.0
        %443 = vmatpush2.msra.mxu0 %v317
        %444 = vmatprep.mubr.f32.mxu0 %v354
        %445 = vmatmul.mubr.f32.gmra.mxu0 %v334
        %v446 = vpop.f32.mrf.mxu0
        %v447 = vadd.f32 0.0, %v446
        %v448 = vpop.f32.mrf.mxu0
        %449 = vmatprep.mubr.f32.mxu0 %v357
        %450 = vmatmul.mubr.f32.gmra.mxu0 %v336
        %v451 = vpop.f32.mrf.mxu0
        %v452 = vadd.f32 0.0, %v451
        %v453 = vpop.f32.mrf.mxu0
        %454 = vmatprep.mubr.f32.mxu0 %v360
        %455 = vmatmul.mubr.f32.gmra.mxu0 %v338
        %v456 = vpop.f32.mrf.mxu0
        %v457 = vadd.f32 0.0, %v456
        %v458 = vpop.f32.mrf.mxu0
        %459 = vmatprep.mubr.f32.mxu0 %v363
        %460 = vmatmul.mubr.f32.gmra.mxu0 %v340
        %v461 = vpop.f32.mrf.mxu0
        %v462 = vadd.f32 0.0, %v461
        %v463 = vpop.f32.mrf.mxu0
        %464 = vmatprep.mubr.f32.mxu0 %v366
        %465 = vmatmul.mubr.f32.gmra.mxu0 %v342
        %v466 = vpop.f32.mrf.mxu0
        %v467 = vadd.f32 0.0, %v466
        %v468 = vpop.f32.mrf.mxu0
        %469 = vmatprep.mubr.f32.mxu0 %v369
        %470 = vmatmul.mubr.f32.gmra.mxu0 %v344
        %v471 = vpop.f32.mrf.mxu0
        %v472 = vadd.f32 0.0, %v471
        %v473 = vpop.f32.mrf.mxu0
        %474 = vmatprep.mubr.f32.mxu0 %v372
        %475 = vmatmul.mubr.f32.gmra.mxu0 %v346
        %v476 = vpop.f32.mrf.mxu0
        %v477 = vadd.f32 0.0, %v476
        %v478 = vpop.f32.mrf.mxu0
        %479 = vmatprep.mubr.f32.mxu0 %v375
        %480 = vmatmul.mubr.f32.gmra.mxu0 %v348
        %v481 = vpop.f32.mrf.mxu0
        %v482 = vadd.f32 0.0, %v481
        %v483 = vpop.f32.mrf.mxu0
        %484 = vmatprep.mubr.f32.mxu0 %v378
        %485 = vmatmul.mubr.f32.gmra.mxu0 %v350
        %v486 = vpop.f32.mrf.mxu0
        %v487 = vadd.f32 0.0, %v486
        %v488 = vpop.f32.mrf.mxu0
        %489 = vdwg.mxu0
        %v490 = vadd.f32 %v325, %v447
        %v491 = vadd.f32 %v326, %v452
        %v492 = vadd.f32 %v327, %v457
        %v493 = vadd.f32 %v328, %v462
        %v494 = vadd.f32 %v329, %v467
        %v495 = vadd.f32 %v330, %v472
        %v496 = vadd.f32 %v331, %v477
        %v497 = vadd.f32 %v332, %v482
        %v498 = vadd.f32 %v333, %v487
        %499 = vst [vmem:[#allocation2] sm:$0xff] %v490
        %500 = vst [vmem:[#allocation2 + $0x8] sm:$0xff] %v491
        %501 = vst [vmem:[#allocation2 + $0x10] sm:$0xff] %v492
        %502 = vst [vmem:[#allocation2 + $0x18] sm:$0xff] %v493
        %503 = vst [vmem:[#allocation2 + $0x20] sm:$0xff] %v494
        %504 = vst [vmem:[#allocation2 + $0x28] sm:$0xff] %v495
        %505 = vst [vmem:[#allocation2 + $0x30] sm:$0xff] %v496
        %506 = vst [vmem:[#allocation2 + $0x38] sm:$0xff] %v497
        %507 = vst [vmem:[#allocation2 + $0x40] sm:$0xff] %v498
        %p508 = scmp.eq.s32.totalorder %s29, 2
        // Predicated region
        $region53: #{tpu_custom_call.1} parent=35 // pred_check
          %p509 = pneg %p508
        $region54: #{tpu_custom_call.1} parent=35 // pred_check_branch
          %511 = sbr.rel (%p509) target = $region56
        $region55: #{tpu_custom_call.1} parent=35 // pred_region
          %512 = vst [vmem:[%s286] sm:$0xff] 0.0
          %513 = vst [vmem:[%s286 + $0x8] sm:$0xff] 0.0
          %514 = vst [vmem:[%s286 + $0x10] sm:$0xff] 0.0
          %515 = vst [vmem:[%s286 + $0x18] sm:$0xff] 0.0
          %516 = vst [vmem:[%s286 + $0x20] sm:$0xff] 0.0
          %517 = vst [vmem:[%s286 + $0x28] sm:$0xff] 0.0
          %518 = vst [vmem:[%s286 + $0x30] sm:$0xff] 0.0
          %519 = vst [vmem:[%s286 + $0x38] sm:$0xff] 0.0
          %520 = vst [vmem:[%s286 + $0x40] sm:$0xff] 0.0
          %521 = vst [vmem:[%s286 + $0x48] sm:$0xff] 0.0
          %522 = vst [vmem:[%s286 + $0x50] sm:$0xff] 0.0
          %523 = vst [vmem:[%s286 + $0x58] sm:$0xff] 0.0
          %524 = vst [vmem:[%s286 + $0x60] sm:$0xff] 0.0
          %525 = vst [vmem:[%s286 + $0x68] sm:$0xff] 0.0
          %526 = vst [vmem:[%s286 + $0x70] sm:$0xff] 0.0
          %527 = vst [vmem:[%s286 + $0x78] sm:$0xff] 0.0
          %528 = vst [vmem:[%s286 + $0x80] sm:$0xff] 0.0
          %529 = vst [vmem:[%s286 + $0x88] sm:$0xff] 0.0
          %530 = vst [vmem:[%s286 + $0x90] sm:$0xff] 0.0
          %531 = vst [vmem:[%s286 + $0x98] sm:$0xff] 0.0
          %532 = vst [vmem:[%s286 + $0xa0] sm:$0xff] 0.0
          %533 = vst [vmem:[%s286 + $0xa8] sm:$0xff] 0.0
          %534 = vst [vmem:[%s286 + $0xb0] sm:$0xff] 0.0
          %535 = vst [vmem:[%s286 + $0xb8] sm:$0xff] 0.0
          %536 = vst [vmem:[%s286 + $0xc0] sm:$0xff] 0.0
          %537 = vst [vmem:[%s286 + $0xc8] sm:$0xff] 0.0
          %538 = vst [vmem:[%s286 + $0xd0] sm:$0xff] 0.0
          %539 = vst [vmem:[%s286 + $0xd8] sm:$0xff] 0.0
          %540 = vst [vmem:[%s286 + $0xe0] sm:$0xff] 0.0
          %541 = vst [vmem:[%s286 + $0xe8] sm:$0xff] 0.0
          %542 = vst [vmem:[%s286 + $0xf0] sm:$0xff] 0.0
          %543 = vst [vmem:[%s286 + $0xf8] sm:$0xff] 0.0
          %544 = vst [vmem:[%s286 + $0x100] sm:$0xff] 0.0
          %545 = vst [vmem:[%s286 + $0x108] sm:$0xff] 0.0
          %546 = vst [vmem:[%s286 + $0x110] sm:$0xff] 0.0
          %547 = vst [vmem:[%s286 + $0x118] sm:$0xff] 0.0
          %v548 = vld [vmem:[#allocation2] sm:$0xff]
          %v549 = vld [vmem:[#allocation8] sm:$0xff]
          %v550 = vld [vmem:[#allocation8 + $0x8] sm:$0xff]
          %v551 = vld [vmem:[#allocation8 + $0x10] sm:$0xff]
          %v552 = vld [vmem:[#allocation8 + $0x18] sm:$0xff]
          %v553 = vld [vmem:[#allocation8 + $0x20] sm:$0xff]
          %v554 = vld [vmem:[#allocation8 + $0x28] sm:$0xff]
          %v555 = vld [vmem:[#allocation8 + $0x30] sm:$0xff]
          %v556 = vld [vmem:[#allocation8 + $0x38] sm:$0xff]
          %v557 = vld [vmem:[#allocation8 + $0x40] sm:$0xff]
          %v558 = vld [vmem:[#allocation8 + $0x48] sm:$0xff]
          %v559 = vld [vmem:[#allocation8 + $0x50] sm:$0xff]
          %v560 = vld [vmem:[#allocation8 + $0x58] sm:$0xff]
          %v561 = vld [vmem:[#allocation8 + $0x60] sm:$0xff]
          %v562 = vld [vmem:[#allocation8 + $0x68] sm:$0xff]
          %v563 = vld [vmem:[#allocation8 + $0x70] sm:$0xff]
          %v564 = vld [vmem:[#allocation8 + $0x78] sm:$0xff]
          %v565 = vld [vmem:[%s3] sm:$0x1]
          %v567 = vlaneseq
          %v568 = vshrl.u32 %v567, 7
          %v569 = vsub.s32 0, %v568
          %v570 = vrot.slane %v565, %v569
          %572 = vmatprep.subr.mxu0 0.0
          %573 = vmatpush1.msra.mxu0 %v564
          %574 = vmatprep.subr.mxu0 0.0
          %575 = vmatpush1.msra.mxu0 %v563
          %576 = vmatprep.subr.mxu0 0.0
          %577 = vmatpush1.msra.mxu0 %v562
          %578 = vmatprep.subr.mxu0 0.0
          %579 = vmatpush1.msra.mxu0 %v561
          %580 = vmatprep.subr.mxu0 0.0
          %581 = vmatpush1.msra.mxu0 %v560
          %582 = vmatprep.subr.mxu0 0.0
          %583 = vmatpush1.msra.mxu0 %v559
          %584 = vmatprep.subr.mxu0 0.0
          %585 = vmatpush1.msra.mxu0 %v558
          %586 = vmatprep.subr.mxu0 0.0
          %587 = vmatpush1.msra.mxu0 %v557
          %588 = vmatprep.subr.mxu0 0.0
          %589 = vmatpush1.msra.mxu0 %v556
          %590 = vmatprep.subr.mxu0 0.0
          %591 = vmatpush1.msra.mxu0 %v555
          %592 = vmatprep.subr.mxu0 0.0
          %593 = vmatpush1.msra.mxu0 %v554
          %594 = vmatprep.subr.mxu0 0.0
          %595 = vmatpush1.msra.mxu0 %v553
          %596 = vmatprep.subr.mxu0 0.0
          %597 = vmatpush1.msra.mxu0 %v552
          %598 = vmatprep.subr.mxu0 0.0
          %599 = vmatpush1.msra.mxu0 %v551
          %600 = vmatprep.subr.mxu0 0.0
          %601 = vmatpush1.msra.mxu0 %v550
          %602 = vmatprep.subr.mxu0 0.0
          %603 = vmatpush1.msra.mxu0 %v549
          %604 = vmatprep.subr.mxu0 0.0
          %605 = vmatpush2.msra.mxu0 0.0
          %606 = vmatprep.subr.mxu0 0.0
          %607 = vmatpush2.msra.mxu0 0.0
          %608 = vmatprep.subr.mxu0 0.0
          %609 = vmatpush2.msra.mxu0 0.0
          %610 = vmatprep.subr.mxu0 0.0
          %611 = vmatpush2.msra.mxu0 0.0
          %612 = vmatprep.subr.mxu0 0.0
          %613 = vmatpush2.msra.mxu0 0.0
          %614 = vmatprep.subr.mxu0 0.0
          %615 = vmatpush2.msra.mxu0 0.0
          %616 = vmatprep.subr.mxu0 0.0
          %617 = vmatpush2.msra.mxu0 0.0
          %618 = vmatprep.subr.mxu0 0.0
          %619 = vmatpush2.msra.mxu0 0.0
          %620 = vmatprep.subr.mxu0 0.0
          %621 = vmatpush2.msra.mxu0 0.0
          %622 = vmatprep.subr.mxu0 0.0
          %623 = vmatpush2.msra.mxu0 0.0
          %624 = vmatprep.subr.mxu0 0.0
          %625 = vmatpush2.msra.mxu0 0.0
          %626 = vmatprep.subr.mxu0 0.0
          %627 = vmatpush2.msra.mxu0 0.0
          %628 = vmatprep.subr.mxu0 0.0
          %629 = vmatpush2.msra.mxu0 0.0
          %630 = vmatprep.subr.mxu0 0.0
          %631 = vmatpush2.msra.mxu0 0.0
          %632 = vmatprep.subr.mxu0 0.0
          %633 = vmatpush2.msra.mxu0 0.0
          %634 = vmatprep.subr.mxu0 0.0
          %635 = vmatpush2.msra.mxu0 0.0
          %636 = vmatprep.mubr.f32.mxu0 0.0
          %637 = vmatmul.mubr.f32.gmra.mxu0 %v548
          %v638 = vpop.f32.mrf.mxu0
          %v639 = vadd.f32 %v570, %v638
          %v640 = vpop.f32.mrf.mxu0
          %641 = vdwg.mxu0
          %v642 = vmax.f32 %v639, 0.0
          %v643 = vlaneseq
          %v644 = vshrl.u32 %v643, 7
          %vm645 = vcmp.lt.s32.totalorder %v644, 1
          %v646 = vsel %vm645, %v642, 0.0
          %647 = vst [vmem:[%s286] sm:$0xff] %v646
          %v648 = vld [vmem:[#allocation2 + $0x8] sm:$0xff]
          %s649 = scalar_lea.vmem [#allocation8], 128
          %v650 = vld [vmem:[%s649] sm:$0xff]
          %v651 = vld [vmem:[%s649 + $0x8] sm:$0xff]
          %v652 = vld [vmem:[%s649 + $0x10] sm:$0xff]
          %v653 = vld [vmem:[%s649 + $0x18] sm:$0xff]
          %v654 = vld [vmem:[%s649 + $0x20] sm:$0xff]
          %v655 = vld [vmem:[%s649 + $0x28] sm:$0xff]
          %v656 = vld [vmem:[%s649 + $0x30] sm:$0xff]
          %v657 = vld [vmem:[%s649 + $0x38] sm:$0xff]
          %v658 = vld [vmem:[%s649 + $0x40] sm:$0xff]
          %v659 = vld [vmem:[%s649 + $0x48] sm:$0xff]
          %v660 = vld [vmem:[%s649 + $0x50] sm:$0xff]
          %v661 = vld [vmem:[%s649 + $0x58] sm:$0xff]
          %v662 = vld [vmem:[%s649 + $0x60] sm:$0xff]
          %v663 = vld [vmem:[%s649 + $0x68] sm:$0xff]
          %v664 = vld [vmem:[%s649 + $0x70] sm:$0xff]
          %v665 = vld [vmem:[%s649 + $0x78] sm:$0xff]
          %s666 = scalar_lea.vmem %s3, 1
          %v667 = vld [vmem:[%s666] sm:$0x1]
          %v669 = vlaneseq
          %v670 = vshrl.u32 %v669, 7
          %v671 = vsub.s32 0, %v670
          %v672 = vrot.slane %v667, %v671
          %674 = vmatprep.subr.mxu0 0.0
          %675 = vmatpush1.msra.mxu0 %v665
          %676 = vmatprep.subr.mxu0 0.0
          %677 = vmatpush1.msra.mxu0 %v664
          %678 = vmatprep.subr.mxu0 0.0
          %679 = vmatpush1.msra.mxu0 %v663
          %680 = vmatprep.subr.mxu0 0.0
          %681 = vmatpush1.msra.mxu0 %v662
          %682 = vmatprep.subr.mxu0 0.0
          %683 = vmatpush1.msra.mxu0 %v661
          %684 = vmatprep.subr.mxu0 0.0
          %685 = vmatpush1.msra.mxu0 %v660
          %686 = vmatprep.subr.mxu0 0.0
          %687 = vmatpush1.msra.mxu0 %v659
          %688 = vmatprep.subr.mxu0 0.0
          %689 = vmatpush1.msra.mxu0 %v658
          %690 = vmatprep.subr.mxu0 0.0
          %691 = vmatpush1.msra.mxu0 %v657
          %692 = vmatprep.subr.mxu0 0.0
          %693 = vmatpush1.msra.mxu0 %v656
          %694 = vmatprep.subr.mxu0 0.0
          %695 = vmatpush1.msra.mxu0 %v655
          %696 = vmatprep.subr.mxu0 0.0
          %697 = vmatpush1.msra.mxu0 %v654
          %698 = vmatprep.subr.mxu0 0.0
          %699 = vmatpush1.msra.mxu0 %v653
          %700 = vmatprep.subr.mxu0 0.0
          %701 = vmatpush1.msra.mxu0 %v652
          %702 = vmatprep.subr.mxu0 0.0
          %703 = vmatpush1.msra.mxu0 %v651
          %704 = vmatprep.subr.mxu0 0.0
          %705 = vmatpush1.msra.mxu0 %v650
          %706 = vmatprep.subr.mxu0 0.0
          %707 = vmatpush2.msra.mxu0 0.0
          %708 = vmatprep.subr.mxu0 0.0
          %709 = vmatpush2.msra.mxu0 0.0
          %710 = vmatprep.subr.mxu0 0.0
          %711 = vmatpush2.msra.mxu0 0.0
          %712 = vmatprep.subr.mxu0 0.0
          %713 = vmatpush2.msra.mxu0 0.0
          %714 = vmatprep.subr.mxu0 0.0
          %715 = vmatpush2.msra.mxu0 0.0
          %716 = vmatprep.subr.mxu0 0.0
          %717 = vmatpush2.msra.mxu0 0.0
          %718 = vmatprep.subr.mxu0 0.0
          %719 = vmatpush2.msra.mxu0 0.0
          %720 = vmatprep.subr.mxu0 0.0
          %721 = vmatpush2.msra.mxu0 0.0
          %722 = vmatprep.subr.mxu0 0.0
          %723 = vmatpush2.msra.mxu0 0.0
          %724 = vmatprep.subr.mxu0 0.0
          %725 = vmatpush2.msra.mxu0 0.0
          %726 = vmatprep.subr.mxu0 0.0
          %727 = vmatpush2.msra.mxu0 0.0
          %728 = vmatprep.subr.mxu0 0.0
          %729 = vmatpush2.msra.mxu0 0.0
          %730 = vmatprep.subr.mxu0 0.0
          %731 = vmatpush2.msra.mxu0 0.0
          %732 = vmatprep.subr.mxu0 0.0
          %733 = vmatpush2.msra.mxu0 0.0
          %734 = vmatprep.subr.mxu0 0.0
          %735 = vmatpush2.msra.mxu0 0.0
          %736 = vmatprep.subr.mxu0 0.0
          %737 = vmatpush2.msra.mxu0 0.0
          %738 = vmatprep.mubr.f32.mxu0 0.0
          %739 = vmatmul.mubr.f32.gmra.mxu0 %v648
          %v740 = vpop.f32.mrf.mxu0
          %v741 = vadd.f32 %v672, %v740
          %v742 = vpop.f32.mrf.mxu0
          %743 = vdwg.mxu0
          %v744 = vmax.f32 %v741, 0.0
          %vm745 = vcmp.lt.s32.totalorder %v644, 4
          %v746 = vsel %vm745, %v744, 0.0
          %747 = vst [vmem:[%s286 + $0x28] sm:$0xff] %v746
          %v748 = vld [vmem:[#allocation2 + $0x10] sm:$0xff]
          %v749 = vld [vmem:[#allocation2 + $0x18] sm:$0xff]
          %s750 = scalar_lea.vmem [#allocation8], 256
          %v751 = vld [vmem:[%s750] sm:$0xff]
          %v752 = vld [vmem:[%s750 + $0x8] sm:$0xff]
          %v753 = vld [vmem:[%s750 + $0x10] sm:$0xff]
          %v754 = vld [vmem:[%s750 + $0x18] sm:$0xff]
          %v755 = vld [vmem:[%s750 + $0x20] sm:$0xff]
          %v756 = vld [vmem:[%s750 + $0x28] sm:$0xff]
          %v757 = vld [vmem:[%s750 + $0x30] sm:$0xff]
          %v758 = vld [vmem:[%s750 + $0x38] sm:$0xff]
          %v759 = vld [vmem:[%s750 + $0x40] sm:$0xff]
          %v760 = vld [vmem:[%s750 + $0x48] sm:$0xff]
          %v761 = vld [vmem:[%s750 + $0x50] sm:$0xff]
          %v762 = vld [vmem:[%s750 + $0x58] sm:$0xff]
          %v763 = vld [vmem:[%s750 + $0x60] sm:$0xff]
          %v764 = vld [vmem:[%s750 + $0x68] sm:$0xff]
          %v765 = vld [vmem:[%s750 + $0x70] sm:$0xff]
          %v766 = vld [vmem:[%s750 + $0x78] sm:$0xff]
          %s767 = scalar_lea.vmem %s3, 2
          %v768 = vld [vmem:[%s767] sm:$0x1]
          %v770 = vlaneseq
          %v771 = vshrl.u32 %v770, 7
          %v772 = vsub.s32 0, %v771
          %v773 = vrot.slane %v768, %v772
          %775 = vmatprep.subr.mxu0 0.0
          %776 = vmatpush1.msra.mxu0 %v766
          %777 = vmatprep.subr.mxu0 0.0
          %778 = vmatpush1.msra.mxu0 %v765
          %779 = vmatprep.subr.mxu0 0.0
          %780 = vmatpush1.msra.mxu0 %v764
          %781 = vmatprep.subr.mxu0 0.0
          %782 = vmatpush1.msra.mxu0 %v763
          %783 = vmatprep.subr.mxu0 0.0
          %784 = vmatpush1.msra.mxu0 %v762
          %785 = vmatprep.subr.mxu0 0.0
          %786 = vmatpush1.msra.mxu0 %v761
          %787 = vmatprep.subr.mxu0 0.0
          %788 = vmatpush1.msra.mxu0 %v760
          %789 = vmatprep.subr.mxu0 0.0
          %790 = vmatpush1.msra.mxu0 %v759
          %791 = vmatprep.subr.mxu0 0.0
          %792 = vmatpush1.msra.mxu0 %v758
          %793 = vmatprep.subr.mxu0 0.0
          %794 = vmatpush1.msra.mxu0 %v757
          %795 = vmatprep.subr.mxu0 0.0
          %796 = vmatpush1.msra.mxu0 %v756
          %797 = vmatprep.subr.mxu0 0.0
          %798 = vmatpush1.msra.mxu0 %v755
          %799 = vmatprep.subr.mxu0 0.0
          %800 = vmatpush1.msra.mxu0 %v754
          %801 = vmatprep.subr.mxu0 0.0
          %802 = vmatpush1.msra.mxu0 %v753
          %803 = vmatprep.subr.mxu0 0.0
          %804 = vmatpush1.msra.mxu0 %v752
          %805 = vmatprep.subr.mxu0 0.0
          %806 = vmatpush1.msra.mxu0 %v751
          %807 = vmatprep.subr.mxu0 0.0
          %808 = vmatpush2.msra.mxu0 0.0
          %809 = vmatprep.subr.mxu0 0.0
          %810 = vmatpush2.msra.mxu0 0.0
          %811 = vmatprep.subr.mxu0 0.0
          %812 = vmatpush2.msra.mxu0 0.0
          %813 = vmatprep.subr.mxu0 0.0
          %814 = vmatpush2.msra.mxu0 0.0
          %815 = vmatprep.subr.mxu0 0.0
          %816 = vmatpush2.msra.mxu0 0.0
          %817 = vmatprep.subr.mxu0 0.0
          %818 = vmatpush2.msra.mxu0 0.0
          %819 = vmatprep.subr.mxu0 0.0
          %820 = vmatpush2.msra.mxu0 0.0
          %821 = vmatprep.subr.mxu0 0.0
          %822 = vmatpush2.msra.mxu0 0.0
          %823 = vmatprep.subr.mxu0 0.0
          %824 = vmatpush2.msra.mxu0 0.0
          %825 = vmatprep.subr.mxu0 0.0
          %826 = vmatpush2.msra.mxu0 0.0
          %827 = vmatprep.subr.mxu0 0.0
          %828 = vmatpush2.msra.mxu0 0.0
          %829 = vmatprep.subr.mxu0 0.0
          %830 = vmatpush2.msra.mxu0 0.0
          %831 = vmatprep.subr.mxu0 0.0
          %832 = vmatpush2.msra.mxu0 0.0
          %833 = vmatprep.subr.mxu0 0.0
          %834 = vmatpush2.msra.mxu0 0.0
          %835 = vmatprep.subr.mxu0 0.0
          %836 = vmatpush2.msra.mxu0 0.0
          %837 = vmatprep.subr.mxu0 0.0
          %838 = vmatpush2.msra.mxu0 0.0
          %839 = vmatprep.mubr.f32.mxu0 0.0
          %840 = vmatmul.mubr.f32.gmra.mxu0 %v748
          %v841 = vpop.f32.mrf.mxu0
          %v842 = vadd.f32 %v773, %v841
          %v843 = vpop.f32.mrf.mxu0
          %844 = vmatprep.mubr.f32.mxu0 0.0
          %845 = vmatmul.mubr.f32.gmra.mxu0 %v749
          %v846 = vpop.f32.mrf.mxu0
          %v847 = vadd.f32 %v773, %v846
          %v848 = vpop.f32.mrf.mxu0
          %849 = vdwg.mxu0
          %v850 = vmax.f32 %v842, 0.0
          %v851 = vmax.f32 %v847, 0.0
          %v852 = vadd.s32 %v644, 8
          %vm853 = vcmp.lt.s32.totalorder %v644, 9
          %vm854 = vcmp.lt.s32.totalorder %v852, 9
          %v855 = vsel %vm853, %v850, 0.0
          %v856 = vsel %vm854, %v851, 0.0
          %857 = vst [vmem:[%s286 + $0x50] sm:$0xff] %v855
          %858 = vst [vmem:[%s286 + $0x70] sm:$0xff] %v856
          %v859 = vld [vmem:[#allocation2 + $0x20] sm:$0xff]
          %v860 = vld [vmem:[#allocation2 + $0x28] sm:$0xff]
          %v861 = vld [vmem:[#allocation2 + $0x30] sm:$0xff]
          %v862 = vld [vmem:[#allocation2 + $0x38] sm:$0xff]
          %v863 = vld [vmem:[#allocation2 + $0x40] sm:$0xff]
          %s864 = scalar_lea.vmem [#allocation8], 384
          %v865 = vld [vmem:[%s864] sm:$0xff]
          %v866 = vld [vmem:[%s864 + $0x8] sm:$0xff]
          %v867 = vld [vmem:[%s864 + $0x10] sm:$0xff]
          %v868 = vld [vmem:[%s864 + $0x18] sm:$0xff]
          %v869 = vld [vmem:[%s864 + $0x20] sm:$0xff]
          %v870 = vld [vmem:[%s864 + $0x28] sm:$0xff]
          %v871 = vld [vmem:[%s864 + $0x30] sm:$0xff]
          %v872 = vld [vmem:[%s864 + $0x38] sm:$0xff]
          %v873 = vld [vmem:[%s864 + $0x40] sm:$0xff]
          %v874 = vld [vmem:[%s864 + $0x48] sm:$0xff]
          %v875 = vld [vmem:[%s864 + $0x50] sm:$0xff]
          %v876 = vld [vmem:[%s864 + $0x58] sm:$0xff]
          %v877 = vld [vmem:[%s864 + $0x60] sm:$0xff]
          %v878 = vld [vmem:[%s864 + $0x68] sm:$0xff]
          %v879 = vld [vmem:[%s864 + $0x70] sm:$0xff]
          %v880 = vld [vmem:[%s864 + $0x78] sm:$0xff]
          %s881 = scalar_lea.vmem %s3, 3
          %v882 = vld [vmem:[%s881] sm:$0x1]
          %v884 = vlaneseq
          %v885 = vshrl.u32 %v884, 7
          %v886 = vsub.s32 0, %v885
          %v887 = vrot.slane %v882, %v886
          %889 = vmatprep.subr.mxu0 0.0
          %890 = vmatpush1.msra.mxu0 %v880
          %891 = vmatprep.subr.mxu0 0.0
          %892 = vmatpush1.msra.mxu0 %v879
          %893 = vmatprep.subr.mxu0 0.0
          %894 = vmatpush1.msra.mxu0 %v878
          %895 = vmatprep.subr.mxu0 0.0
          %896 = vmatpush1.msra.mxu0 %v877
          %897 = vmatprep.subr.mxu0 0.0
          %898 = vmatpush1.msra.mxu0 %v876
          %899 = vmatprep.subr.mxu0 0.0
          %900 = vmatpush1.msra.mxu0 %v875
          %901 = vmatprep.subr.mxu0 0.0
          %902 = vmatpush1.msra.mxu0 %v874
          %903 = vmatprep.subr.mxu0 0.0
          %904 = vmatpush1.msra.mxu0 %v873
          %905 = vmatprep.subr.mxu0 0.0
          %906 = vmatpush1.msra.mxu0 %v872
          %907 = vmatprep.subr.mxu0 0.0
          %908 = vmatpush1.msra.mxu0 %v871
          %909 = vmatprep.subr.mxu0 0.0
          %910 = vmatpush1.msra.mxu0 %v870
          %911 = vmatprep.subr.mxu0 0.0
          %912 = vmatpush1.msra.mxu0 %v869
          %913 = vmatprep.subr.mxu0 0.0
          %914 = vmatpush1.msra.mxu0 %v868
          %915 = vmatprep.subr.mxu0 0.0
          %916 = vmatpush1.msra.mxu0 %v867
          %917 = vmatprep.subr.mxu0 0.0
          %918 = vmatpush1.msra.mxu0 %v866
          %919 = vmatprep.subr.mxu0 0.0
          %920 = vmatpush1.msra.mxu0 %v865
          %921 = vmatprep.subr.mxu0 0.0
          %922 = vmatpush2.msra.mxu0 0.0
          %923 = vmatprep.subr.mxu0 0.0
          %924 = vmatpush2.msra.mxu0 0.0
          %925 = vmatprep.subr.mxu0 0.0
          %926 = vmatpush2.msra.mxu0 0.0
          %927 = vmatprep.subr.mxu0 0.0
          %928 = vmatpush2.msra.mxu0 0.0
          %929 = vmatprep.subr.mxu0 0.0
          %930 = vmatpush2.msra.mxu0 0.0
          %931 = vmatprep.subr.mxu0 0.0
          %932 = vmatpush2.msra.mxu0 0.0
          %933 = vmatprep.subr.mxu0 0.0
          %934 = vmatpush2.msra.mxu0 0.0
          %935 = vmatprep.subr.mxu0 0.0
          %936 = vmatpush2.msra.mxu0 0.0
          %937 = vmatprep.subr.mxu0 0.0
          %938 = vmatpush2.msra.mxu0 0.0
          %939 = vmatprep.subr.mxu0 0.0
          %940 = vmatpush2.msra.mxu0 0.0
          %941 = vmatprep.subr.mxu0 0.0
          %942 = vmatpush2.msra.mxu0 0.0
          %943 = vmatprep.subr.mxu0 0.0
          %944 = vmatpush2.msra.mxu0 0.0
          %945 = vmatprep.subr.mxu0 0.0
          %946 = vmatpush2.msra.mxu0 0.0
          %947 = vmatprep.subr.mxu0 0.0
          %948 = vmatpush2.msra.mxu0 0.0
          %949 = vmatprep.subr.mxu0 0.0
          %950 = vmatpush2.msra.mxu0 0.0
          %951 = vmatprep.subr.mxu0 0.0
          %952 = vmatpush2.msra.mxu0 0.0
          %953 = vmatprep.mubr.f32.mxu0 0.0
          %954 = vmatmul.mubr.f32.gmra.mxu0 %v859
          %v955 = vpop.f32.mrf.mxu0
          %v956 = vadd.f32 %v887, %v955
          %v957 = vpop.f32.mrf.mxu0
          %958 = vmatprep.mubr.f32.mxu0 0.0
          %959 = vmatmul.mubr.f32.gmra.mxu0 %v860
          %v960 = vpop.f32.mrf.mxu0
          %v961 = vadd.f32 %v887, %v960
          %v962 = vpop.f32.mrf.mxu0
          %963 = vmatprep.mubr.f32.mxu0 0.0
          %964 = vmatmul.mubr.f32.gmra.mxu0 %v861
          %v965 = vpop.f32.mrf.mxu0
          %v966 = vadd.f32 %v887, %v965
          %v967 = vpop.f32.mrf.mxu0
          %968 = vmatprep.mubr.f32.mxu0 0.0
          %969 = vmatmul.mubr.f32.gmra.mxu0 %v862
          %v970 = vpop.f32.mrf.mxu0
          %v971 = vadd.f32 %v887, %v970
          %v972 = vpop.f32.mrf.mxu0
          %973 = vmatprep.mubr.f32.mxu0 0.0
          %974 = vmatmul.mubr.f32.gmra.mxu0 %v863
          %v975 = vpop.f32.mrf.mxu0
          %v976 = vadd.f32 %v887, %v975
          %v977 = vpop.f32.mrf.mxu0
          %978 = vdwg.mxu0
          %v979 = vmax.f32 %v956, 0.0
          %v980 = vmax.f32 %v961, 0.0
          %v981 = vmax.f32 %v966, 0.0
          %v982 = vmax.f32 %v971, 0.0
          %v983 = vmax.f32 %v976, 0.0
          %v984 = vadd.s32 %v644, 16
          %v985 = vadd.s32 %v644, 24
          %v986 = vadd.s32 %v644, 32
          %vm987 = vcmp.lt.s32.totalorder %v644, 36
          %vm988 = vcmp.lt.s32.totalorder %v852, 36
          %vm989 = vcmp.lt.s32.totalorder %v984, 36
          %vm990 = vcmp.lt.s32.totalorder %v985, 36
          %vm991 = vcmp.lt.s32.totalorder %v986, 36
          %v992 = vsel %vm987, %v979, 0.0
          %v993 = vsel %vm988, %v980, 0.0
          %v994 = vsel %vm989, %v981, 0.0
          %v995 = vsel %vm990, %v982, 0.0
          %v996 = vsel %vm991, %v983, 0.0
          %997 = vst [vmem:[%s286 + $0x98] sm:$0xff] %v992
          %998 = vst [vmem:[%s286 + $0xb8] sm:$0xff] %v993
          %999 = vst [vmem:[%s286 + $0xd8] sm:$0xff] %v994
          %1000 = vst [vmem:[%s286 + $0xf8] sm:$0xff] %v995
          %1001 = vst [vmem:[%s286 + $0x118] sm:$0xff] %v996
        $region56: #{tpu_custom_call.1} parent=35 // pred_fallthru
          _
        %s1002 = sand.u32 %s140, 1
        %s1003 = scalar_lea.sflag [#allocation5], %s1002
        %s1004 = sand.u32 %s140, 1
        %s1005 = smul.addr %s1004, 288
        %s1006 = scalar_lea.vmem [#allocation9], %s1005
        // Predicated region
        $region57: #{tpu_custom_call.1} parent=35 // pred_check
          %p1007 = pneg %p150
        $region58: #{tpu_custom_call.1} parent=35 // pred_check_branch
          %1009 = sbr.rel (%p1007) target = $region60
        $region59: #{tpu_custom_call.1} parent=35 // pred_region
          %s1011 = ssub.s32 4608, 4608
          %1012 = vsyncadd %s1003, %s1011
          %s1013 = smul.addr %s28, 36
          %s1014 = smul.addr %s1013, 128
          %s1015 = scalar_lea.hbm %s4, %s1014
          %s1016 = sshll.u32 %s1006, 4
          %s1017 = int_to_ptr.vmem [resolvable:$true] %s1016
          %1022 = dma.vmem_to_hbm [thread:$0]  %s1017, 4608, %s1015, %s1003, 512, 512, 32
        $region60: #{tpu_custom_call.1} parent=35 // pred_fallthru
          _
      $region36: #{tpu_custom_call.1} parent=5 // pred_fallthru
        _
      %p1023 = scmp.le.s32.totalorder 2, %s19
      // Predicated region
      $region61: #{tpu_custom_call.1} parent=5 // pred_check
        %p1024 = pneg %p1023
      $region62: #{tpu_custom_call.1} parent=5 // pred_check_branch
        %1026 = sbr.rel (%p1024) target = $region64
      $region63: #{tpu_custom_call.1} parent=5 // pred_region
        %s1027 = ssub.s32 %s19, 2
        // Predicated region
        $region65: #{tpu_custom_call.1} parent=63 // pred_check
          %p1028 = pneg %p156
        $region66: #{tpu_custom_call.1} parent=63 // pred_check_branch
          %1030 = sbr.rel (%p1028) target = $region68
        $region67: #{tpu_custom_call.1} parent=63 // pred_region
          %s1031 = sand.u32 %s141, 1
          %s1032 = scalar_lea.sflag [#allocation5], %s1031
          %s1033 = sand.u32 %s141, 1
          %s1034 = smul.addr %s1033, 288
          %s1035 = scalar_lea.vmem [#allocation9], %s1034
          %1036 = dma.done %s1032, 4608
        $region68: #{tpu_custom_call.1} parent=63 // pred_fallthru
          _
      $region64: #{tpu_custom_call.1} parent=5 // pred_fallthru
        _
    $region6: #{tpu_custom_call.1} parent=1 // loop_footer
      %s23 = sadd.s32 1, %s19
    $region7: #{tpu_custom_call.1} parent=1 // loop_footer_branch
      %18 = sbr.rel target = $region3
    $region8: #{tpu_custom_call.1} parent=1 // loop_exit
      _
    %1037 = vsyncpa [#allocation4], 1
    %s1038 = scalar_lea.sflag [#allocation4], 1
    %1039 = vsyncpa %s1038, 1
    %1040 = vsyncpa [#allocation7], 1
    %s1041 = scalar_lea.sflag [#allocation7], 1
    %1042 = vsyncpa %s1041, 1
    %1043 = vsyncpa [#allocation5], 1
    %s1044 = scalar_lea.sflag [#allocation5], 1
    %1045 = vsyncpa %s1044, 1

</llo_original>
